<compile_context>
chip_gen: v5e
topology: v5e:2x2
jax: 0.10.0
libtpu: 0.0.40
codegen_flags: <defaults>
</compile_context>

<pallas_src>
import math

import jax
import jax.numpy as jnp
from jax.experimental import pallas as pl
from jax.experimental.pallas import tpu as pltpu

# ---------------- small synthetic BERT config ----------------
VOCAB = 128
MAX_POS = 16
TYPE_VOCAB = 2
HIDDEN = 64            # D
NUM_HEADS = 4          # H
HEAD_DIM = HIDDEN // NUM_HEADS
INTERMEDIATE = 128     # I (4 * D, like BERT)
NUM_LAYERS = 2
LN_EPS = 1e-12         # BERT layer_norm_eps


# ---------------- in-kernel math helpers (f32 vector path) ----------------
def _ln(x, g, b):
    mu = jnp.mean(x, axis=-1, keepdims=True)
    var = jnp.mean(jnp.square(x - mu), axis=-1, keepdims=True)
    return (x - mu) * jax.lax.rsqrt(var + LN_EPS) * g + b


def _erf(x):
    # Abramowitz & Stegun 7.1.26 polynomial (|err| < 1.5e-7 ~ f32 eps); built only from
    # exp/mul/add/div, all of which lower cleanly in Mosaic.
    a1, a2, a3, a4, a5 = 0.254829592, -0.284496736, 1.421413741, -1.453152027, 1.061405429
    p = 0.3275911
    s = jnp.where(x >= 0.0, 1.0, -1.0)
    ax = jnp.abs(x)
    t = 1.0 / (1.0 + p * ax)
    poly = ((((a5 * t + a4) * t + a3) * t + a2) * t + a1) * t
    return s * (1.0 - poly * jnp.exp(-ax * ax))


def _gelu_exact(x):
    # HF BERT uses exact erf-GELU; use the in-kernel erf polynomial.
    return 0.5 * x * (1.0 + _erf(x * 0.7071067811865476))


# ---------------- kernel factory: one encoder layer per (b, l) grid step ----------------
def _make_kernel(S, S_PAD):
    H, Hd, D, I = NUM_HEADS, HEAD_DIM, HIDDEN, INTERMEDIATE
    bf16 = jnp.bfloat16
    scale = 1.0 / math.sqrt(Hd)

    def kernel(emb_ref, mask_ref, embln_ref, wqkv_ref, wo_ref, wi_ref, wo2_ref,
               vec_ref, out_ref, x_scr):
        l = pl.program_id(1)

        # At layer 0: embedding LayerNorm initializes the resident hidden state.
        @pl.when(l == 0)
        def _():
            x_scr[...] = _ln(emb_ref[0], embln_ref[0:1, :], embln_ref[1:2, :])

        x = x_scr[...]                        # (S, D) f32 hidden state (carried over l)
        mask_bias = mask_ref[0]               # (1, S) additive key mask

        # Packed f32 vectors: one row per bias / LN parameter.
        vec = vec_ref[0]                      # (8, 3D) f32
        bqkv = vec[0:1, :]                    # (1, 3D)
        bo, ln1g, ln1b = vec[1:2, :D], vec[2:3, :D], vec[3:4, :D]
        bi = vec[4:5, :I]
        bo2, ln2g, ln2b = vec[5:6, :D], vec[6:7, :D], vec[7:8, :D]

        # ---- fused QKV projection: single lane-dense (S,D)x(D,3D) MXU pass ----
        qkv = jnp.dot(x.astype(bf16), wqkv_ref[0],
                      preferred_element_type=jnp.float32) + bqkv        # (S, 3D) f32

        def split_heads(c0):                  # view heads: (S, D) slab -> (H, S, Hd) bf16
            return jnp.stack([qkv[:, c0 + h * Hd: c0 + (h + 1) * Hd]
                              for h in range(H)], axis=0).astype(bf16)

        qh, kh, vh = split_heads(0), split_heads(D), split_heads(2 * D)

        # ---- scores + softmax (f32 vector math) ----
        scores = jnp.einsum("hqd,hkd->hqk", qh, kh,
                            preferred_element_type=jnp.float32) * scale  # (H, S, S)
        scores = scores + mask_bias
        m = jnp.max(scores, axis=-1, keepdims=True)
        e = jnp.exp(scores - m)
        probs = e / jnp.sum(e, axis=-1, keepdims=True)   # exact normalize (stored output)

        # Lane-dense store of the probs: pad keys to S_PAD (=128) lanes; host slices back.
        if S_PAD > S:
            out_ref[0, 0] = jnp.concatenate(
                [probs, jnp.zeros((H, S, S_PAD - S), jnp.float32)], axis=-1)
        else:
            out_ref[0, 0] = probs

        # ---- context + merged-head output projection: single K=D matmul ----
        ctx = jnp.einsum("hqk,hkd->hqd", probs.astype(bf16), vh,
                         preferred_element_type=jnp.float32)             # (H, S, Hd)
        ctx_m = jnp.concatenate([ctx[h] for h in range(H)], axis=-1)     # (S, D)
        attn = jnp.dot(ctx_m.astype(bf16), wo_ref[0],
                       preferred_element_type=jnp.float32) + bo          # (S, D)
        h1 = _ln(attn + x, ln1g, ln1b)        # post-attention LN (residual)

        # ---- feed-forward ----
        inter = _gelu_exact(jnp.dot(h1.astype(bf16), wi_ref[0],
                                    preferred_element_type=jnp.float32) + bi)   # (S, I)
        ffn = jnp.dot(inter.astype(bf16), wo2_ref[0],
                      preferred_element_type=jnp.float32) + bo2
        x_scr[...] = _ln(ffn + h1, ln2g, ln2b)  # output LN (residual), carried to layer l+1

    return kernel


# ---------------- host-side weight packing (stacked over layers) ----------------
def _pack_vec_slab(lp):
    """All per-layer f32 vectors in one (8, 3D) slab, one row per vector (lane 0 aligned)."""
    D3 = 3 * HIDDEN

    def row(v):
        v = v.reshape(1, -1)
        return jnp.pad(v, ((0, 0), (0, D3 - v.shape[1])))

    rows = [jnp.concatenate([lp["bq"], lp["bk"], lp["bv"]], axis=-1),   # (1, 3D)
            row(lp["bo"]), row(lp["ln1_g"]), row(lp["ln1_b"]),
            row(lp["bi"]), row(lp["bo2"]), row(lp["ln2_g"]), row(lp["ln2_b"])]
    return jnp.concatenate(rows, axis=0)                                # (8, 3D) f32


def _stack_layer_weights(layers):
    bf = jnp.bfloat16
    wqkv = jnp.stack([jnp.concatenate([lp["wq"], lp["wk"], lp["wv"]], axis=1)
                      for lp in layers]).astype(bf)            # (L, D, 3D)
    wo = jnp.stack([lp["wo"] for lp in layers]).astype(bf)     # (L, D, D)
    wi = jnp.stack([lp["wi"] for lp in layers]).astype(bf)     # (L, D, I)
    wo2 = jnp.stack([lp["wo2"] for lp in layers]).astype(bf)   # (L, I, D)
    vecs = jnp.stack([_pack_vec_slab(lp) for lp in layers])    # (L, 8, 3D) f32
    return wqkv, wo, wi, wo2, vecs


# ---------------- parameter init (deterministic, synthetic) ----------------
def init_params(key):
    def normal(k, shape, scale=0.02):
        return scale * jax.random.normal(k, shape, dtype=jnp.float32)

    keys = jax.random.split(key, 3 + NUM_LAYERS)
    params = {
        "word_emb": normal(keys[0], (VOCAB, HIDDEN)),
        "pos_emb": normal(keys[1], (MAX_POS, HIDDEN)),
        "type_emb": normal(keys[2], (TYPE_VOCAB, HIDDEN)),
        "emb_ln_g": jnp.ones((1, HIDDEN), jnp.float32),
        "emb_ln_b": jnp.zeros((1, HIDDEN), jnp.float32),
        "layers": [],
    }
    D, I = HIDDEN, INTERMEDIATE
    for l in range(NUM_LAYERS):
        lk = jax.random.split(keys[3 + l], 6)
        params["layers"].append({
            # weights stored as (in, out), i.e. PyTorch Linear weight transposed
            "wq": normal(lk[0], (D, D)), "bq": jnp.zeros((1, D), jnp.float32),
            "wk": normal(lk[1], (D, D)), "bk": jnp.zeros((1, D), jnp.float32),
            "wv": normal(lk[2], (D, D)), "bv": jnp.zeros((1, D), jnp.float32),
            "wo": normal(lk[3], (D, D)), "bo": jnp.zeros((1, D), jnp.float32),
            "ln1_g": jnp.ones((1, D), jnp.float32), "ln1_b": jnp.zeros((1, D), jnp.float32),
            "wi": normal(lk[4], (D, I)), "bi": jnp.zeros((1, I), jnp.float32),
            "wo2": normal(lk[5], (I, D)), "bo2": jnp.zeros((1, D), jnp.float32),
            "ln2_g": jnp.ones((1, D), jnp.float32), "ln2_b": jnp.zeros((1, D), jnp.float32),
        })
    return params


# ---------------- BertClassifier.forward equivalent ----------------
def bert_classifier_forward(params, input_ids, attention_mask, token_type_ids=None):
    """Returns outputs.attentions: a tuple of [B, H, S, S] attention prob arrays."""
    B, S = input_ids.shape
    L, H, D, I = NUM_LAYERS, NUM_HEADS, HIDDEN, INTERMEDIATE
    D3 = 3 * D
    S_PAD = ((S + 127) // 128) * 128         # lane-dense key dim for the stored probs

    if token_type_ids is None:
        token_type_ids = jnp.zeros((B, S), jnp.int32)

    # TODO(synk): embedding-table gathers stay as plain-JAX glue (tiny lookups, no Pallas
    # gather win at this size); everything downstream runs in one Pallas call.
    emb = (params["word_emb"][input_ids]
           + params["pos_emb"][jnp.arange(S)][None, :, :]
           + params["type_emb"][token_type_ids]).astype(jnp.float32)

    # HF extended attention mask, clamped to -1e9 instead of finfo.min so a fully masked
    # row degrades to uniform probs instead of NaN.
    mask_bias = ((1.0 - attention_mask.astype(jnp.float32)) * -1e9).reshape(B, 1, S)
    emb_ln = jnp.concatenate([params["emb_ln_g"], params["emb_ln_b"]], axis=0)   # (2, D)

    wqkv, wo, wi, wo2, vecs = _stack_layer_weights(params["layers"])

    out = pl.pallas_call(
        _make_kernel(S, S_PAD),
        grid=(B, L),
        in_specs=[
            pl.BlockSpec((1, S, D),  lambda b, l: (b, 0, 0)),   # embeddings
            pl.BlockSpec((1, 1, S),  lambda b, l: (b, 0, 0)),   # additive key mask
            pl.BlockSpec((2, D),     lambda b, l: (0, 0)),      # embedding LN gamma/beta
            pl.BlockSpec((1, D, D3), lambda b, l: (l, 0, 0)),   # fused QKV weight (bf16)
            pl.BlockSpec((1, D, D),  lambda b, l: (l, 0, 0)),   # attn output proj (bf16)
            pl.BlockSpec((1, D, I),  lambda b, l: (l, 0, 0)),   # FFN in (bf16)
            pl.BlockSpec((1, I, D),  lambda b, l: (l, 0, 0)),   # FFN out (bf16)
            pl.BlockSpec((1, 8, D3), lambda b, l: (l, 0, 0)),   # packed biases / LN (f32)
        ],
        out_specs=pl.BlockSpec((1, 1, H, S, S_PAD), lambda b, l: (b, l, 0, 0, 0)),
        out_shape=jax.ShapeDtypeStruct((B, L, H, S, S_PAD), jnp.float32),
        scratch_shapes=[pltpu.VMEM((S, D), jnp.float32)],       # hidden state, carried over l
        compiler_params=pltpu.CompilerParams(
            dimension_semantics=("parallel", "arbitrary"),
            vmem_limit_bytes=48 * 1024 * 1024),
    )(emb, mask_bias, emb_ln, wqkv, wo, wi, wo2, vecs)

    attn = out[..., :S]                       # drop the lane padding of the key dim
    return tuple(attn[:, l] for l in range(L))   # == outputs.attentions


if __name__ == "__main__":
    B, S = 2, 8
    key = jax.random.PRNGKey(0)
    pkey, idkey = jax.random.split(key)

    params = init_params(pkey)
    input_ids = jax.random.randint(idkey, (B, S), 0, VOCAB, dtype=jnp.int32)
    attention_mask = jnp.ones((B, S), jnp.int32).at[1, 6:].set(0)  # pad 2 tokens of seq 1

    attns = bert_classifier_forward(params, input_ids, attention_mask, token_type_ids=None)
    attns = jax.block_until_ready(attns)

    assert isinstance(attns, tuple) and len(attns) == NUM_LAYERS
    for a in attns:
        assert a.shape == (B, NUM_HEADS, S, S)
        assert a.dtype == jnp.float32
        assert bool(jnp.all(jnp.isfinite(a)))
        # softmax rows sum to 1 (exact f32 normalization; tolerance covers bf16 scores)
        assert bool(jnp.allclose(jnp.sum(a, axis=-1), 1.0, atol=1e-2))
        # padded keys of sequence 1 receive ~zero attention probability
        assert bool(jnp.all(a[1, :, :, 6:] < 1e-6))

    print("KERNEL_OK")
</pallas_src>

<mosaic_0001>
module attributes {stable_mosaic.version = 11 : i64} {
  func.func @kernel(%arg0: i32, %arg1: i32, %arg2: memref<1x8x64xf32, #tpu.memory_space<vmem>>, %arg3: memref<1x1x8xf32, #tpu.memory_space<vmem>>, %arg4: memref<2x64xf32, #tpu.memory_space<vmem>>, %arg5: memref<1x64x192xbf16, #tpu.memory_space<vmem>>, %arg6: memref<1x64x64xbf16, #tpu.memory_space<vmem>>, %arg7: memref<1x64x128xbf16, #tpu.memory_space<vmem>>, %arg8: memref<1x128x64xbf16, #tpu.memory_space<vmem>>, %arg9: memref<1x8x192xf32, #tpu.memory_space<vmem>>, %arg10: memref<1x1x4x8x128xf32, #tpu.memory_space<vmem>>, %arg11: memref<8x64xf32, #tpu.memory_space<vmem>>) attributes {dimension_semantics = [#tpu.dimension_semantics<parallel>, #tpu.dimension_semantics<arbitrary>], iteration_bounds = array<i64: 2, 2>, scalar_prefetch = 0 : i64, scratch_operands = 1 : i64, tpu.core_type = #tpu.core_type<tc>, window_params = [{transform_indices = @transform_0, window_bounds = array<i64: 1, 8, 64>}, {transform_indices = @transform_1, window_bounds = array<i64: 1, 1, 8>}, {pipeline_mode = #tpu.pipeline_mode<synchronous>, transform_indices = @transform_2, window_bounds = array<i64: 2, 64>}, {transform_indices = @transform_3, window_bounds = array<i64: 1, 64, 192>}, {transform_indices = @transform_4, window_bounds = array<i64: 1, 64, 64>}, {transform_indices = @transform_5, window_bounds = array<i64: 1, 64, 128>}, {transform_indices = @transform_6, window_bounds = array<i64: 1, 128, 64>}, {transform_indices = @transform_7, window_bounds = array<i64: 1, 8, 192>}, {transform_indices = @transform_8, window_bounds = array<i64: 1, 1, 4, 8, 128>}]} {
    %c0_i32 = arith.constant 0 : i32
    %0 = arith.cmpi eq, %arg1, %c0_i32 : i32
    %1 = arith.extui %0 : i1 to i32
    %c0_i32_0 = arith.constant 0 : i32
    %2 = arith.cmpi ne, %1, %c0_i32_0 : i32
    scf.if %2 {
      %c0_62 = arith.constant 0 : index
      %c0_63 = arith.constant 0 : index
      %c0_64 = arith.constant 0 : index
      %189 = vector.load %arg2[%c0_62, %c0_63, %c0_64] : memref<1x8x64xf32, #tpu.memory_space<vmem>>, vector<1x8x64xf32>
      %190 = vector.shape_cast %189 : vector<1x8x64xf32> to vector<8x64xf32>
      %c0_65 = arith.constant 0 : index
      %c0_66 = arith.constant 0 : index
      %191 = vector.load %arg4[%c0_65, %c0_66] : memref<2x64xf32, #tpu.memory_space<vmem>>, vector<1x64xf32>
      %c1 = arith.constant 1 : index
      %c0_67 = arith.constant 0 : index
      %192 = vector.load %arg4[%c1, %c0_67] : memref<2x64xf32, #tpu.memory_space<vmem>>, vector<1x64xf32>
      %cst_68 = arith.constant dense<0.000000e+00> : vector<8xf32>
      %193 = vector.multi_reduction <add>, %190, %cst_68 [1] : vector<8x64xf32> to vector<8xf32>
      %194 = vector.shape_cast %193 : vector<8xf32> to vector<8x1xf32>
      %cst_69 = arith.constant 6.400000e+01 : f32
      %195 = vector.broadcast %cst_69 : f32 to vector<8x1xf32>
      %196 = arith.divf %194, %195 : vector<8x1xf32>
      %197 = vector.broadcast %196 : vector<8x1xf32> to vector<8x64xf32>
      %198 = arith.subf %190, %197 : vector<8x64xf32>
      %199 = arith.mulf %198, %198 : vector<8x64xf32>
      %cst_70 = arith.constant dense<0.000000e+00> : vector<8xf32>
      %200 = vector.multi_reduction <add>, %199, %cst_70 [1] : vector<8x64xf32> to vector<8xf32>
      %201 = vector.shape_cast %200 : vector<8xf32> to vector<8x1xf32>
      %cst_71 = arith.constant 6.400000e+01 : f32
      %202 = vector.broadcast %cst_71 : f32 to vector<8x1xf32>
      %203 = arith.divf %201, %202 : vector<8x1xf32>
      %204 = vector.broadcast %196 : vector<8x1xf32> to vector<8x64xf32>
      %205 = arith.subf %190, %204 : vector<8x64xf32>
      %cst_72 = arith.constant 9.99999996E-13 : f32
      %206 = vector.broadcast %cst_72 : f32 to vector<8x1xf32>
      %207 = arith.addf %203, %206 : vector<8x1xf32>
      %208 = math.rsqrt %207 : vector<8x1xf32>
      %209 = vector.broadcast %208 : vector<8x1xf32> to vector<8x64xf32>
      %210 = arith.mulf %205, %209 : vector<8x64xf32>
      %211 = vector.broadcast %191 : vector<1x64xf32> to vector<8x64xf32>
      %212 = arith.mulf %210, %211 : vector<8x64xf32>
      %213 = vector.broadcast %192 : vector<1x64xf32> to vector<8x64xf32>
      %214 = arith.addf %212, %213 : vector<8x64xf32>
      %c0_73 = arith.constant 0 : index
      %c0_74 = arith.constant 0 : index
      %215 = vector.load %arg11[%c0_73, %c0_74] : memref<8x64xf32, #tpu.memory_space<vmem>>, vector<8x64xf32>
      tpu.vector_store %arg11[%c0_73, %c0_74], %214 {strides = array<i32>} : memref<8x64xf32, #tpu.memory_space<vmem>>, vector<8x64xf32>,
    } else {
    }
    %c0 = arith.constant 0 : index
    %c0_1 = arith.constant 0 : index
    %3 = vector.load %arg11[%c0, %c0_1] : memref<8x64xf32, #tpu.memory_space<vmem>>, vector<8x64xf32>
    %c0_2 = arith.constant 0 : index
    %c0_3 = arith.constant 0 : index
    %c0_4 = arith.constant 0 : index
    %4 = vector.load %arg3[%c0_2, %c0_3, %c0_4] : memref<1x1x8xf32, #tpu.memory_space<vmem>>, vector<1x1x8xf32>
    %5 = vector.shape_cast %4 : vector<1x1x8xf32> to vector<1x8xf32>
    %c0_5 = arith.constant 0 : index
    %c0_6 = arith.constant 0 : index
    %c0_7 = arith.constant 0 : index
    %6 = vector.load %arg9[%c0_5, %c0_6, %c0_7] : memref<1x8x192xf32, #tpu.memory_space<vmem>>, vector<1x8x192xf32>
    %7 = vector.shape_cast %6 : vector<1x8x192xf32> to vector<8x192xf32>
    %8 = vector.extract_strided_slice %7 {offsets = [0, 0], sizes = [1, 192], strides = [1, 1]} : vector<8x192xf32> to vector<1x192xf32>
    %9 = vector.extract_strided_slice %7 {offsets = [1, 0], sizes = [1, 64], strides = [1, 1]} : vector<8x192xf32> to vector<1x64xf32>
    %10 = vector.extract_strided_slice %7 {offsets = [2, 0], sizes = [1, 64], strides = [1, 1]} : vector<8x192xf32> to vector<1x64xf32>
    %11 = vector.extract_strided_slice %7 {offsets = [3, 0], sizes = [1, 64], strides = [1, 1]} : vector<8x192xf32> to vector<1x64xf32>
    %12 = vector.extract_strided_slice %7 {offsets = [4, 0], sizes = [1, 128], strides = [1, 1]} : vector<8x192xf32> to vector<1x128xf32>
    %13 = vector.extract_strided_slice %7 {offsets = [5, 0], sizes = [1, 64], strides = [1, 1]} : vector<8x192xf32> to vector<1x64xf32>
    %14 = vector.extract_strided_slice %7 {offsets = [6, 0], sizes = [1, 64], strides = [1, 1]} : vector<8x192xf32> to vector<1x64xf32>
    %15 = vector.extract_strided_slice %7 {offsets = [7, 0], sizes = [1, 64], strides = [1, 1]} : vector<8x192xf32> to vector<1x64xf32>
    %16 = arith.truncf %3 : vector<8x64xf32> to vector<8x64xbf16>
    %c0_8 = arith.constant 0 : index
    %c0_9 = arith.constant 0 : index
    %c0_10 = arith.constant 0 : index
    %17 = vector.load %arg5[%c0_8, %c0_9, %c0_10] : memref<1x64x192xbf16, #tpu.memory_space<vmem>>, vector<1x64x192xbf16>
    %18 = vector.shape_cast %17 : vector<1x64x192xbf16> to vector<64x192xbf16>
    %cst = arith.constant dense<0.000000e+00> : vector<8x192xf32>
    %19 = tpu.matmul %16, %18, %cst {dimension_numbers = #tpu.dot_dimension_numbers<[1], [0], [0], [1], [0, 0, 1, 1], [], []>} : vector<8x64xbf16>, vector<64x192xbf16>, vector<8x192xf32> -> vector<8x192xf32>
    %20 = vector.broadcast %8 : vector<1x192xf32> to vector<8x192xf32>
    %21 = arith.addf %19, %20 : vector<8x192xf32>
    %22 = vector.extract_strided_slice %21 {offsets = [0, 0], sizes = [8, 16], strides = [1, 1]} : vector<8x192xf32> to vector<8x16xf32>
    %23 = vector.extract_strided_slice %21 {offsets = [0, 16], sizes = [8, 16], strides = [1, 1]} : vector<8x192xf32> to vector<8x16xf32>
    %24 = vector.extract_strided_slice %21 {offsets = [0, 32], sizes = [8, 16], strides = [1, 1]} : vector<8x192xf32> to vector<8x16xf32>
    %25 = vector.extract_strided_slice %21 {offsets = [0, 48], sizes = [8, 16], strides = [1, 1]} : vector<8x192xf32> to vector<8x16xf32>
    %26 = vector.shape_cast %22 : vector<8x16xf32> to vector<1x8x16xf32>
    %27 = vector.shape_cast %23 : vector<8x16xf32> to vector<1x8x16xf32>
    %28 = vector.shape_cast %24 : vector<8x16xf32> to vector<1x8x16xf32>
    %29 = vector.shape_cast %25 : vector<8x16xf32> to vector<1x8x16xf32>
    %30 = tpu.concatenate %26, %27, %28, %29 in 0 : vector<1x8x16xf32>, vector<1x8x16xf32>, vector<1x8x16xf32>, vector<1x8x16xf32> -> vector<4x8x16xf32>
    %31 = arith.truncf %30 : vector<4x8x16xf32> to vector<4x8x16xbf16>
    %32 = vector.extract_strided_slice %21 {offsets = [0, 64], sizes = [8, 16], strides = [1, 1]} : vector<8x192xf32> to vector<8x16xf32>
    %33 = vector.extract_strided_slice %21 {offsets = [0, 80], sizes = [8, 16], strides = [1, 1]} : vector<8x192xf32> to vector<8x16xf32>
    %34 = vector.extract_strided_slice %21 {offsets = [0, 96], sizes = [8, 16], strides = [1, 1]} : vector<8x192xf32> to vector<8x16xf32>
    %35 = vector.extract_strided_slice %21 {offsets = [0, 112], sizes = [8, 16], strides = [1, 1]} : vector<8x192xf32> to vector<8x16xf32>
    %36 = vector.shape_cast %32 : vector<8x16xf32> to vector<1x8x16xf32>
    %37 = vector.shape_cast %33 : vector<8x16xf32> to vector<1x8x16xf32>
    %38 = vector.shape_cast %34 : vector<8x16xf32> to vector<1x8x16xf32>
    %39 = vector.shape_cast %35 : vector<8x16xf32> to vector<1x8x16xf32>
    %40 = tpu.concatenate %36, %37, %38, %39 in 0 : vector<1x8x16xf32>, vector<1x8x16xf32>, vector<1x8x16xf32>, vector<1x8x16xf32> -> vector<4x8x16xf32>
    %41 = arith.truncf %40 : vector<4x8x16xf32> to vector<4x8x16xbf16>
    %42 = vector.extract_strided_slice %21 {offsets = [0, 128], sizes = [8, 16], strides = [1, 1]} : vector<8x192xf32> to vector<8x16xf32>
    %43 = vector.extract_strided_slice %21 {offsets = [0, 144], sizes = [8, 16], strides = [1, 1]} : vector<8x192xf32> to vector<8x16xf32>
    %44 = vector.extract_strided_slice %21 {offsets = [0, 160], sizes = [8, 16], strides = [1, 1]} : vector<8x192xf32> to vector<8x16xf32>
    %45 = vector.extract_strided_slice %21 {offsets = [0, 176], sizes = [8, 16], strides = [1, 1]} : vector<8x192xf32> to vector<8x16xf32>
    %46 = vector.shape_cast %42 : vector<8x16xf32> to vector<1x8x16xf32>
    %47 = vector.shape_cast %43 : vector<8x16xf32> to vector<1x8x16xf32>
    %48 = vector.shape_cast %44 : vector<8x16xf32> to vector<1x8x16xf32>
    %49 = vector.shape_cast %45 : vector<8x16xf32> to vector<1x8x16xf32>
    %50 = tpu.concatenate %46, %47, %48, %49 in 0 : vector<1x8x16xf32>, vector<1x8x16xf32>, vector<1x8x16xf32>, vector<1x8x16xf32> -> vector<4x8x16xf32>
    %51 = arith.truncf %50 : vector<4x8x16xf32> to vector<4x8x16xbf16>
    "tpu.trace_start"() <{level = 10 : i32, message = "hqd,hkd->hqk"}> : () -> ()
    %cst_11 = arith.constant dense<0.000000e+00> : vector<4x8x8xf32>
    %52 = tpu.matmul %31, %41, %cst_11 {dimension_numbers = #tpu.dot_dimension_numbers<[2], [2], [1], [1], [0, 0, 0, 1, 1, 1], [0], [0]>} : vector<4x8x16xbf16>, vector<4x8x16xbf16>, vector<4x8x8xf32> -> vector<4x8x8xf32>
    "tpu.trace_stop"() : () -> ()
    %cst_12 = arith.constant 2.500000e-01 : f32
    %53 = vector.broadcast %cst_12 : f32 to vector<4x8x8xf32>
    %54 = arith.mulf %52, %53 : vector<4x8x8xf32>
    %55 = vector.shape_cast %5 : vector<1x8xf32> to vector<1x1x8xf32>
    %56 = vector.broadcast %55 : vector<1x1x8xf32> to vector<4x8x8xf32>
    %57 = arith.addf %54, %56 : vector<4x8x8xf32>
    %cst_13 = arith.constant dense<0xFF800000> : vector<4x8xf32>
    %58 = vector.multi_reduction <maximumf>, %57, %cst_13 [2] : vector<4x8x8xf32> to vector<4x8xf32>
    %59 = vector.shape_cast %58 : vector<4x8xf32> to vector<4x8x1xf32>
    %60 = vector.broadcast %59 : vector<4x8x1xf32> to vector<4x8x8xf32>
    %61 = arith.subf %57, %60 : vector<4x8x8xf32>
    %62 = math.exp %61 : vector<4x8x8xf32>
    %cst_14 = arith.constant dense<0.000000e+00> : vector<4x8xf32>
    %63 = vector.multi_reduction <add>, %62, %cst_14 [2] : vector<4x8x8xf32> to vector<4x8xf32>
    %64 = vector.shape_cast %63 : vector<4x8xf32> to vector<4x8x1xf32>
    %65 = vector.broadcast %64 : vector<4x8x1xf32> to vector<4x8x8xf32>
    %66 = arith.divf %62, %65 : vector<4x8x8xf32>
    %cst_15 = arith.constant 0.000000e+00 : f32
    %67 = vector.broadcast %cst_15 : f32 to vector<4x8x120xf32>
    %68 = tpu.concatenate %66, %67 in 2 : vector<4x8x8xf32>, vector<4x8x120xf32> -> vector<4x8x128xf32>
    %c0_16 = arith.constant 0 : index
    %c0_17 = arith.constant 0 : index
    %c0_18 = arith.constant 0 : index
    %c0_19 = arith.constant 0 : index
    %c0_20 = arith.constant 0 : index
    %69 = vector.load %arg10[%c0_16, %c0_17, %c0_18, %c0_19, %c0_20] : memref<1x1x4x8x128xf32, #tpu.memory_space<vmem>>, vector<1x1x4x8x128xf32>
    %70 = vector.shape_cast %69 : vector<1x1x4x8x128xf32> to vector<4x8x128xf32>
    %71 = vector.shape_cast %68 : vector<4x8x128xf32> to vector<1x1x4x8x128xf32>
    tpu.vector_store %arg10[%c0_16, %c0_17, %c0_18, %c0_19, %c0_20], %71 {strides = array<i32>} : memref<1x1x4x8x128xf32, #tpu.memory_space<vmem>>, vector<1x1x4x8x128xf32>,
    %72 = arith.truncf %66 : vector<4x8x8xf32> to vector<4x8x8xbf16>
    "tpu.trace_start"() <{level = 10 : i32, message = "hqk,hkd->hqd"}> : () -> ()
    %cst_21 = arith.constant dense<0.000000e+00> : vector<4x8x16xf32>
    %73 = tpu.matmul %72, %51, %cst_21 {dimension_numbers = #tpu.dot_dimension_numbers<[2], [1], [1], [2], [0, 0, 0, 1, 1, 2], [0], [0]>} : vector<4x8x8xbf16>, vector<4x8x16xbf16>, vector<4x8x16xf32> -> vector<4x8x16xf32>
    "tpu.trace_stop"() : () -> ()
    %74 = vector.extract_strided_slice %73 {offsets = [0, 0, 0], sizes = [1, 8, 16], strides = [1, 1, 1]} : vector<4x8x16xf32> to vector<1x8x16xf32>
    %75 = vector.shape_cast %74 : vector<1x8x16xf32> to vector<8x16xf32>
    %76 = vector.extract_strided_slice %73 {offsets = [1, 0, 0], sizes = [1, 8, 16], strides = [1, 1, 1]} : vector<4x8x16xf32> to vector<1x8x16xf32>
    %77 = vector.shape_cast %76 : vector<1x8x16xf32> to vector<8x16xf32>
    %78 = vector.extract_strided_slice %73 {offsets = [2, 0, 0], sizes = [1, 8, 16], strides = [1, 1, 1]} : vector<4x8x16xf32> to vector<1x8x16xf32>
    %79 = vector.shape_cast %78 : vector<1x8x16xf32> to vector<8x16xf32>
    %80 = vector.extract_strided_slice %73 {offsets = [3, 0, 0], sizes = [1, 8, 16], strides = [1, 1, 1]} : vector<4x8x16xf32> to vector<1x8x16xf32>
    %81 = vector.shape_cast %80 : vector<1x8x16xf32> to vector<8x16xf32>
    %82 = tpu.concatenate %75, %77, %79, %81 in 1 : vector<8x16xf32>, vector<8x16xf32>, vector<8x16xf32>, vector<8x16xf32> -> vector<8x64xf32>
    %83 = arith.truncf %82 : vector<8x64xf32> to vector<8x64xbf16>
    %c0_22 = arith.constant 0 : index
    %c0_23 = arith.constant 0 : index
    %c0_24 = arith.constant 0 : index
    %84 = vector.load %arg6[%c0_22, %c0_23, %c0_24] : memref<1x64x64xbf16, #tpu.memory_space<vmem>>, vector<1x64x64xbf16>
    %85 = vector.shape_cast %84 : vector<1x64x64xbf16> to vector<64x64xbf16>
    %cst_25 = arith.constant dense<0.000000e+00> : vector<8x64xf32>
    %86 = tpu.matmul %83, %85, %cst_25 {dimension_numbers = #tpu.dot_dimension_numbers<[1], [0], [0], [1], [0, 0, 1, 1], [], []>} : vector<8x64xbf16>, vector<64x64xbf16>, vector<8x64xf32> -> vector<8x64xf32>
    %87 = vector.broadcast %9 : vector<1x64xf32> to vector<8x64xf32>
    %88 = arith.addf %86, %87 : vector<8x64xf32>
    %89 = arith.addf %88, %3 : vector<8x64xf32>
    %cst_26 = arith.constant dense<0.000000e+00> : vector<8xf32>
    %90 = vector.multi_reduction <add>, %89, %cst_26 [1] : vector<8x64xf32> to vector<8xf32>
    %91 = vector.shape_cast %90 : vector<8xf32> to vector<8x1xf32>
    %cst_27 = arith.constant 6.400000e+01 : f32
    %92 = vector.broadcast %cst_27 : f32 to vector<8x1xf32>
    %93 = arith.divf %91, %92 : vector<8x1xf32>
    %94 = vector.broadcast %93 : vector<8x1xf32> to vector<8x64xf32>
    %95 = arith.subf %89, %94 : vector<8x64xf32>
    %96 = arith.mulf %95, %95 : vector<8x64xf32>
    %cst_28 = arith.constant dense<0.000000e+00> : vector<8xf32>
    %97 = vector.multi_reduction <add>, %96, %cst_28 [1] : vector<8x64xf32> to vector<8xf32>
    %98 = vector.shape_cast %97 : vector<8xf32> to vector<8x1xf32>
    %cst_29 = arith.constant 6.400000e+01 : f32
    %99 = vector.broadcast %cst_29 : f32 to vector<8x1xf32>
    %100 = arith.divf %98, %99 : vector<8x1xf32>
    %101 = vector.broadcast %93 : vector<8x1xf32> to vector<8x64xf32>
    %102 = arith.subf %89, %101 : vector<8x64xf32>
    %cst_30 = arith.constant 9.99999996E-13 : f32
    %103 = vector.broadcast %cst_30 : f32 to vector<8x1xf32>
    %104 = arith.addf %100, %103 : vector<8x1xf32>
    %105 = math.rsqrt %104 : vector<8x1xf32>
    %106 = vector.broadcast %105 : vector<8x1xf32> to vector<8x64xf32>
    %107 = arith.mulf %102, %106 : vector<8x64xf32>
    %108 = vector.broadcast %10 : vector<1x64xf32> to vector<8x64xf32>
    %109 = arith.mulf %107, %108 : vector<8x64xf32>
    %110 = vector.broadcast %11 : vector<1x64xf32> to vector<8x64xf32>
    %111 = arith.addf %109, %110 : vector<8x64xf32>
    %112 = arith.truncf %111 : vector<8x64xf32> to vector<8x64xbf16>
    %c0_31 = arith.constant 0 : index
    %c0_32 = arith.constant 0 : index
    %c0_33 = arith.constant 0 : index
    %113 = vector.load %arg7[%c0_31, %c0_32, %c0_33] : memref<1x64x128xbf16, #tpu.memory_space<vmem>>, vector<1x64x128xbf16>
    %114 = vector.shape_cast %113 : vector<1x64x128xbf16> to vector<64x128xbf16>
    %cst_34 = arith.constant dense<0.000000e+00> : vector<8x128xf32>
    %115 = tpu.matmul %112, %114, %cst_34 {dimension_numbers = #tpu.dot_dimension_numbers<[1], [0], [0], [1], [0, 0, 1, 1], [], []>} : vector<8x64xbf16>, vector<64x128xbf16>, vector<8x128xf32> -> vector<8x128xf32>
    %116 = vector.broadcast %12 : vector<1x128xf32> to vector<8x128xf32>
    %117 = arith.addf %115, %116 : vector<8x128xf32>
    %cst_35 = arith.constant 5.000000e-01 : f32
    %118 = vector.broadcast %cst_35 : f32 to vector<8x128xf32>
    %119 = arith.mulf %118, %117 : vector<8x128xf32>
    %cst_36 = arith.constant 0.707106769 : f32
    %120 = vector.broadcast %cst_36 : f32 to vector<8x128xf32>
    %121 = arith.mulf %117, %120 : vector<8x128xf32>
    %cst_37 = arith.constant 0.000000e+00 : f32
    %122 = vector.broadcast %cst_37 : f32 to vector<8x128xf32>
    %123 = arith.cmpf oge, %121, %122 : vector<8x128xf32>
    %cst_38 = arith.constant 1.000000e+00 : f32
    %cst_39 = arith.constant -1.000000e+00 : f32
    %124 = vector.broadcast %cst_38 : f32 to vector<8x128xf32>
    %125 = vector.broadcast %cst_39 : f32 to vector<8x128xf32>
    %126 = arith.select %123, %124, %125 : vector<8x128xi1>, vector<8x128xf32>
    %127 = math.absf %121 : vector<8x128xf32>
    %cst_40 = arith.constant 0.327591091 : f32
    %128 = vector.broadcast %cst_40 : f32 to vector<8x128xf32>
    %129 = arith.mulf %128, %127 : vector<8x128xf32>
    %cst_41 = arith.constant 1.000000e+00 : f32
    %130 = vector.broadcast %cst_41 : f32 to vector<8x128xf32>
    %131 = arith.addf %130, %129 : vector<8x128xf32>
    %cst_42 = arith.constant 1.000000e+00 : f32
    %132 = vector.broadcast %cst_42 : f32 to vector<8x128xf32>
    %133 = arith.divf %132, %131 : vector<8x128xf32>
    %cst_43 = arith.constant 1.06140542 : f32
    %134 = vector.broadcast %cst_43 : f32 to vector<8x128xf32>
    %135 = arith.mulf %134, %133 : vector<8x128xf32>
    %cst_44 = arith.constant -1.45315206 : f32
    %136 = vector.broadcast %cst_44 : f32 to vector<8x128xf32>
    %137 = arith.addf %135, %136 : vector<8x128xf32>
    %138 = arith.mulf %137, %133 : vector<8x128xf32>
    %cst_45 = arith.constant 1.42141378 : f32
    %139 = vector.broadcast %cst_45 : f32 to vector<8x128xf32>
    %140 = arith.addf %138, %139 : vector<8x128xf32>
    %141 = arith.mulf %140, %133 : vector<8x128xf32>
    %cst_46 = arith.constant -0.284496725 : f32
    %142 = vector.broadcast %cst_46 : f32 to vector<8x128xf32>
    %143 = arith.addf %141, %142 : vector<8x128xf32>
    %144 = arith.mulf %143, %133 : vector<8x128xf32>
    %cst_47 = arith.constant 0.254829586 : f32
    %145 = vector.broadcast %cst_47 : f32 to vector<8x128xf32>
    %146 = arith.addf %144, %145 : vector<8x128xf32>
    %147 = arith.mulf %146, %133 : vector<8x128xf32>
    %cst_48 = arith.constant 0.000000e+00 : f32
    %148 = vector.broadcast %cst_48 : f32 to vector<8x128xf32>
    %149 = arith.subf %148, %127 : vector<8x128xf32>
    %150 = arith.mulf %149, %127 : vector<8x128xf32>
    %151 = math.exp %150 : vector<8x128xf32>
    %152 = arith.mulf %147, %151 : vector<8x128xf32>
    %cst_49 = arith.constant 1.000000e+00 : f32
    %153 = vector.broadcast %cst_49 : f32 to vector<8x128xf32>
    %154 = arith.subf %153, %152 : vector<8x128xf32>
    %155 = arith.mulf %126, %154 : vector<8x128xf32>
    %cst_50 = arith.constant 1.000000e+00 : f32
    %156 = vector.broadcast %cst_50 : f32 to vector<8x128xf32>
    %157 = arith.addf %156, %155 : vector<8x128xf32>
    %158 = arith.mulf %119, %157 : vector<8x128xf32>
    %159 = arith.truncf %158 : vector<8x128xf32> to vector<8x128xbf16>
    %c0_51 = arith.constant 0 : index
    %c0_52 = arith.constant 0 : index
    %c0_53 = arith.constant 0 : index
    %160 = vector.load %arg8[%c0_51, %c0_52, %c0_53] : memref<1x128x64xbf16, #tpu.memory_space<vmem>>, vector<1x128x64xbf16>
    %161 = vector.shape_cast %160 : vector<1x128x64xbf16> to vector<128x64xbf16>
    %cst_54 = arith.constant dense<0.000000e+00> : vector<8x64xf32>
    %162 = tpu.matmul %159, %161, %cst_54 {dimension_numbers = #tpu.dot_dimension_numbers<[1], [0], [0], [1], [0, 0, 1, 1], [], []>} : vector<8x128xbf16>, vector<128x64xbf16>, vector<8x64xf32> -> vector<8x64xf32>
    %163 = vector.broadcast %13 : vector<1x64xf32> to vector<8x64xf32>
    %164 = arith.addf %162, %163 : vector<8x64xf32>
    %165 = arith.addf %164, %111 : vector<8x64xf32>
    %cst_55 = arith.constant dense<0.000000e+00> : vector<8xf32>
    %166 = vector.multi_reduction <add>, %165, %cst_55 [1] : vector<8x64xf32> to vector<8xf32>
    %167 = vector.shape_cast %166 : vector<8xf32> to vector<8x1xf32>
    %cst_56 = arith.constant 6.400000e+01 : f32
    %168 = vector.broadcast %cst_56 : f32 to vector<8x1xf32>
    %169 = arith.divf %167, %168 : vector<8x1xf32>
    %170 = vector.broadcast %169 : vector<8x1xf32> to vector<8x64xf32>
    %171 = arith.subf %165, %170 : vector<8x64xf32>
    %172 = arith.mulf %171, %171 : vector<8x64xf32>
    %cst_57 = arith.constant dense<0.000000e+00> : vector<8xf32>
    %173 = vector.multi_reduction <add>, %172, %cst_57 [1] : vector<8x64xf32> to vector<8xf32>
    %174 = vector.shape_cast %173 : vector<8xf32> to vector<8x1xf32>
    %cst_58 = arith.constant 6.400000e+01 : f32
    %175 = vector.broadcast %cst_58 : f32 to vector<8x1xf32>
    %176 = arith.divf %174, %175 : vector<8x1xf32>
    %177 = vector.broadcast %169 : vector<8x1xf32> to vector<8x64xf32>
    %178 = arith.subf %165, %177 : vector<8x64xf32>
    %cst_59 = arith.constant 9.99999996E-13 : f32
    %179 = vector.broadcast %cst_59 : f32 to vector<8x1xf32>
    %180 = arith.addf %176, %179 : vector<8x1xf32>
    %181 = math.rsqrt %180 : vector<8x1xf32>
    %182 = vector.broadcast %181 : vector<8x1xf32> to vector<8x64xf32>
    %183 = arith.mulf %178, %182 : vector<8x64xf32>
    %184 = vector.broadcast %14 : vector<1x64xf32> to vector<8x64xf32>
    %185 = arith.mulf %183, %184 : vector<8x64xf32>
    %186 = vector.broadcast %15 : vector<1x64xf32> to vector<8x64xf32>
    %187 = arith.addf %185, %186 : vector<8x64xf32>
    %c0_60 = arith.constant 0 : index
    %c0_61 = arith.constant 0 : index
    %188 = vector.load %arg11[%c0_60, %c0_61] : memref<8x64xf32, #tpu.memory_space<vmem>>, vector<8x64xf32>
    tpu.vector_store %arg11[%c0_60, %c0_61], %187 {strides = array<i32>} : memref<8x64xf32, #tpu.memory_space<vmem>>, vector<8x64xf32>,
    return
  }
  func.func @transform_0(%arg0: i32, %arg1: i32) -> (i32, i32, i32) {
    %c0_i32 = arith.constant 0 : i32
    %c0_i32_0 = arith.constant 0 : i32
    %c0_i32_1 = arith.constant 0 : i32
    return %arg0, %c0_i32, %c0_i32_0 : i32, i32, i32
  }
  func.func @transform_1(%arg0: i32, %arg1: i32) -> (i32, i32, i32) {
    %c0_i32 = arith.constant 0 : i32
    %c0_i32_0 = arith.constant 0 : i32
    %c0_i32_1 = arith.constant 0 : i32
    return %arg0, %c0_i32, %c0_i32_0 : i32, i32, i32
  }
  func.func @transform_2(%arg0: i32, %arg1: i32) -> (i32, i32) {
    %c0_i32 = arith.constant 0 : i32
    %c0_i32_0 = arith.constant 0 : i32
    %c0_i32_1 = arith.constant 0 : i32
    return %c0_i32, %c0_i32_0 : i32, i32
  }
  func.func @transform_3(%arg0: i32, %arg1: i32) -> (i32, i32, i32) {
    %c0_i32 = arith.constant 0 : i32
    %c0_i32_0 = arith.constant 0 : i32
    %c0_i32_1 = arith.constant 0 : i32
    return %arg1, %c0_i32, %c0_i32_0 : i32, i32, i32
  }
  func.func @transform_4(%arg0: i32, %arg1: i32) -> (i32, i32, i32) {
    %c0_i32 = arith.constant 0 : i32
    %c0_i32_0 = arith.constant 0 : i32
    %c0_i32_1 = arith.constant 0 : i32
    return %arg1, %c0_i32, %c0_i32_0 : i32, i32, i32
  }
  func.func @transform_5(%arg0: i32, %arg1: i32) -> (i32, i32, i32) {
    %c0_i32 = arith.constant 0 : i32
    %c0_i32_0 = arith.constant 0 : i32
    %c0_i32_1 = arith.constant 0 : i32
    return %arg1, %c0_i32, %c0_i32_0 : i32, i32, i32
  }
  func.func @transform_6(%arg0: i32, %arg1: i32) -> (i32, i32, i32) {
    %c0_i32 = arith.constant 0 : i32
    %c0_i32_0 = arith.constant 0 : i32
    %c0_i32_1 = arith.constant 0 : i32
    return %arg1, %c0_i32, %c0_i32_0 : i32, i32, i32
  }
  func.func @transform_7(%arg0: i32, %arg1: i32) -> (i32, i32, i32) {
    %c0_i32 = arith.constant 0 : i32
    %c0_i32_0 = arith.constant 0 : i32
    %c0_i32_1 = arith.constant 0 : i32
    return %arg1, %c0_i32, %c0_i32_0 : i32, i32, i32
  }
  func.func @transform_8(%arg0: i32, %arg1: i32) -> (i32, i32, i32, i32, i32) {
    %c0_i32 = arith.constant 0 : i32
    %c0_i32_0 = arith.constant 0 : i32
    %c0_i32_1 = arith.constant 0 : i32
    %c0_i32_2 = arith.constant 0 : i32
    return %arg0, %arg1, %c0_i32, %c0_i32_0, %c0_i32_1 : i32, i32, i32, i32, i32
  }
}

</mosaic_0001>

<llo_original>
// kernel: tpu_custom_call.1
$region0: #{tpu_custom_call.1}
  #allocation0 [shape = 'u32[]', space=smem, size = 0x4, offset = 0x4, fixed_abs, tag = 'smem constant byte address 0x4 - core index']
  #allocation1 [shape = 'u32[72,128]{1,0:T(1,128)}', space=vmem, size = 0x9000, scoped, tag = 'internal scratch']
  #allocation2 [shape = 'f32[8,64]{1,0:T(8,128)}', space=vmem, size = 0x1000, scoped, tag = 'scratch operand']
  %s0 = inlined_call_operand.hbm [shape: f32[2,8,64], index: 0, kind: input, shape index: {}]
  %s1 = inlined_call_operand.vmem [shape: f32[2,1,8], index: 1, kind: input, shape index: {}]
  %s2 = inlined_call_operand.hbm [shape: f32[2,64], index: 2, kind: input, shape index: {}]
  %s3 = inlined_call_operand.vmem [shape: bf16[2,64,192], index: 3, kind: input, shape index: {}]
  %s4 = inlined_call_operand.vmem [shape: bf16[2,64,64], index: 4, kind: input, shape index: {}]
  %s5 = inlined_call_operand.hbm [shape: bf16[2,64,128], index: 5, kind: input, shape index: {}]
  %s6 = inlined_call_operand.vmem [shape: bf16[2,128,64], index: 6, kind: input, shape index: {}]
  %s7 = inlined_call_operand.hbm [shape: f32[2,8,192], index: 7, kind: input, shape index: {}]
  %s8 = inlined_call_operand.hbm [shape: f32[2,2,4,8,128], index: 8, kind: output, shape index: {}]
  %s9 = sld [smem:[#allocation0]]
  $region85: #{tpu_custom_call.1} parent=0
    _
  %s11 = ssub.s32 1, %s9
  %s12 = scalar_select 0, %s11, %s9
  $region1: #{tpu_custom_call.1} parent=0
    #allocation3 [shape = 'u8[8192]{0}', space=vmem, size = 0x2000, scoped, tag = 'input window, operand 0']
    #allocation4 [shape = 's32[2]{0}', space=sflag, size = 0x8, scoped, tag = 'scoped memory for tpu_custom_call.1']
    #allocation5 [shape = 's32[2]{0}', space=sflag, size = 0x8, scoped, tag = 'scoped memory for tpu_custom_call.1']
    #allocation6 [shape = 'u8[1024]{0}', space=vmem, size = 0x400, scoped, tag = 'input window, operand 2, single buffered']
    #allocation7 [shape = 's32[1]{0}', space=sflag, size = 0x4, scoped, tag = 'scoped memory for tpu_custom_call.1']
    #allocation8 [shape = 'u8[32768]{0}', space=vmem, size = 0x8000, scoped, tag = 'input window, operand 5']
    #allocation9 [shape = 'u8[16384]{0}', space=vmem, size = 0x4000, scoped, tag = 'input window, operand 7']
    #allocation10 [shape = 'u8[32768]{0}', space=vmem, size = 0x8000, scoped, tag = 'output window, operand 0']
    %13 = vsyncpa [#allocation4], 0
    %s14 = scalar_lea.sflag [#allocation4], 1
    %15 = vsyncpa %s14, 0
    %16 = vsyncpa [#allocation7], 0
    %17 = vsyncpa [#allocation5], 0
    %s18 = scalar_lea.sflag [#allocation5], 1
    %19 = vsyncpa %s18, 0
    loop: start=0, step=1, limit=6
    $region2: #{tpu_custom_call.1} parent=1 // loop_pre_header
      _
    $region3: #{tpu_custom_call.1} parent=1 // loop_header
      %s21 = sphi 0, %s25
      %p22 = scmp.ge.s32.totalorder %s21, 6
      %s28 = sphi 0, %s40
      %s29 = sphi 0, %s36
      %s30 = sphi 0, %s28
      %s31 = sphi 0, %s29
      %s32 = sphi 0, %s30
      %s33 = sphi 0, %s31
      %s43 = sphi 0, %s45
      %s46 = sphi 0, %s43
      %s47 = sphi 0, %s46
      %s63 = sphi 0, %s47
      %s69 = sphi 0, %s71
      %s72 = sphi 0, %s69
      %s73 = sphi 0, %s72
      %s89 = sphi 0, %s73
      %s93 = sphi 0, %s93
      %s95 = sphi 0, %s93
      %s96 = sphi 0, %s95
      %s110 = sphi 0, %s96
      %s116 = sphi 0, %s118
      %s119 = sphi 0, %s116
      %s120 = sphi 0, %s119
      %s136 = sphi 0, %s120
      %s142 = sphi 0, %s144
      %s145 = sphi 0, %s142
      %s146 = sphi 0, %s145
      %s162 = sphi 0, %s146
      %s168 = sphi 0, %s170
      %s171 = sphi 0, %s168
      %s172 = sphi 0, %s171
      %s188 = sphi 0, %s172
      %s194 = sphi 0, %s196
      %s197 = sphi 0, %s194
      %s198 = sphi 0, %s197
      %s214 = sphi 0, %s198
      %s220 = sphi 0, %s222
      %s223 = sphi 0, %s220
      %s224 = sphi 0, %s223
      %s240 = sphi 0, %s224
      %s248 = sphi 0, %s250
      %s251 = sphi 0, %s248
      %s252 = sphi 0, %s251
      %s268 = sphi 0, %s252
    $region4: #{tpu_custom_call.1} parent=1 // loop_header_branch
      %24 = sbr.rel (%p22) target = $region8
    $region5: #{tpu_custom_call.1} parent=1 // loop_body
      %s26 = ssub.s32 %s21, 1
      %s27 = ssub.s32 %s21, 2
      %s34 = sadd.s32 1, %s29
      %p35 = scmp.ge.s32.totalorder %s34, 2
      %s36 = scalar_select %p35, 0, %s34
      %s37 = sadd.s32 1, %s28
      %s38 = scalar_select %p35, %s37, %s28
      %p39 = scmp.ge.s32.totalorder %s38, 2
      %s40 = scalar_select %p39, 0, %s38
      %s41 = ssub.s32 %s28, %s40
      %p42 = scmp.eq.s32.totalorder %s41, 0
      %s44 = sadd.s32 %s43, 1
      %s45 = scalar_select %p42, %s43, %s44
      %p48 = pneg %p42
      %p49 = scmp.eq.s32.totalorder %s21, 3
      %p50 = por %p48, %p49
      %p51 = scmp.ne.s32.totalorder %s43, %s46
      %p52 = scmp.eq.s32.totalorder %s21, 0
      %p53 = por %p51, %p52
      %p54 = scmp.ne.s32.totalorder %s43, %s46
      %p55 = scmp.eq.s32.totalorder %s26, 3
      %p56 = por %p54, %p55
      %p57 = scmp.ne.s32.totalorder %s46, %s47
      %p58 = scmp.eq.s32.totalorder %s26, 0
      %p59 = por %p57, %p58
      %p60 = scmp.ne.s32.totalorder %s46, %s47
      %p61 = scmp.eq.s32.totalorder %s27, 3
      %p62 = por %p60, %p61
      %p64 = scmp.ne.s32.totalorder %s47, %s63
      %p65 = scmp.eq.s32.totalorder %s27, 0
      %p66 = por %p64, %p65
      %s67 = ssub.s32 %s28, %s40
      %p68 = scmp.eq.s32.totalorder %s67, 0
      %s70 = sadd.s32 %s69, 1
      %s71 = scalar_select %p68, %s69, %s70
      %p74 = pneg %p68
      %p75 = scmp.eq.s32.totalorder %s21, 3
      %p76 = por %p74, %p75
      %p77 = scmp.ne.s32.totalorder %s69, %s72
      %p78 = scmp.eq.s32.totalorder %s21, 0
      %p79 = por %p77, %p78
      %p80 = scmp.ne.s32.totalorder %s69, %s72
      %p81 = scmp.eq.s32.totalorder %s26, 3
      %p82 = por %p80, %p81
      %p83 = scmp.ne.s32.totalorder %s72, %s73
      %p84 = scmp.eq.s32.totalorder %s26, 0
      %p85 = por %p83, %p84
      %p86 = scmp.ne.s32.totalorder %s72, %s73
      %p87 = scmp.eq.s32.totalorder %s27, 3
      %p88 = por %p86, %p87
      %p90 = scmp.ne.s32.totalorder %s73, %s89
      %p91 = scmp.eq.s32.totalorder %s27, 0
      %p92 = por %p90, %p91
      %s94 = sadd.s32 %s93, 1
      %p97 = scmp.eq.s32.totalorder %s21, 3
      %p98 = scmp.ne.s32.totalorder %s93, %s95
      %p99 = scmp.eq.s32.totalorder %s21, 0
      %p100 = por %p98, %p99
      %p101 = scmp.ne.s32.totalorder %s93, %s95
      %p102 = scmp.eq.s32.totalorder %s26, 3
      %p103 = por %p101, %p102
      %p104 = scmp.ne.s32.totalorder %s95, %s96
      %p105 = scmp.eq.s32.totalorder %s26, 0
      %p106 = por %p104, %p105
      %p107 = scmp.ne.s32.totalorder %s95, %s96
      %p108 = scmp.eq.s32.totalorder %s27, 3
      %p109 = por %p107, %p108
      %p111 = scmp.ne.s32.totalorder %s96, %s110
      %p112 = scmp.eq.s32.totalorder %s27, 0
      %p113 = por %p111, %p112
      %s114 = ssub.s32 %s29, %s36
      %p115 = scmp.eq.s32.totalorder %s114, 0
      %s117 = sadd.s32 %s116, 1
      %s118 = scalar_select %p115, %s116, %s117
      %p121 = pneg %p115
      %p122 = scmp.eq.s32.totalorder %s21, 3
      %p123 = por %p121, %p122
      %p124 = scmp.ne.s32.totalorder %s116, %s119
      %p125 = scmp.eq.s32.totalorder %s21, 0
      %p126 = por %p124, %p125
      %p127 = scmp.ne.s32.totalorder %s116, %s119
      %p128 = scmp.eq.s32.totalorder %s26, 3
      %p129 = por %p127, %p128
      %p130 = scmp.ne.s32.totalorder %s119, %s120
      %p131 = scmp.eq.s32.totalorder %s26, 0
      %p132 = por %p130, %p131
      %p133 = scmp.ne.s32.totalorder %s119, %s120
      %p134 = scmp.eq.s32.totalorder %s27, 3
      %p135 = por %p133, %p134
      %p137 = scmp.ne.s32.totalorder %s120, %s136
      %p138 = scmp.eq.s32.totalorder %s27, 0
      %p139 = por %p137, %p138
      %s140 = ssub.s32 %s29, %s36
      %p141 = scmp.eq.s32.totalorder %s140, 0
      %s143 = sadd.s32 %s142, 1
      %s144 = scalar_select %p141, %s142, %s143
      %p147 = pneg %p141
      %p148 = scmp.eq.s32.totalorder %s21, 3
      %p149 = por %p147, %p148
      %p150 = scmp.ne.s32.totalorder %s142, %s145
      %p151 = scmp.eq.s32.totalorder %s21, 0
      %p152 = por %p150, %p151
      %p153 = scmp.ne.s32.totalorder %s142, %s145
      %p154 = scmp.eq.s32.totalorder %s26, 3
      %p155 = por %p153, %p154
      %p156 = scmp.ne.s32.totalorder %s145, %s146
      %p157 = scmp.eq.s32.totalorder %s26, 0
      %p158 = por %p156, %p157
      %p159 = scmp.ne.s32.totalorder %s145, %s146
      %p160 = scmp.eq.s32.totalorder %s27, 3
      %p161 = por %p159, %p160
      %p163 = scmp.ne.s32.totalorder %s146, %s162
      %p164 = scmp.eq.s32.totalorder %s27, 0
      %p165 = por %p163, %p164
      %s166 = ssub.s32 %s29, %s36
      %p167 = scmp.eq.s32.totalorder %s166, 0
      %s169 = sadd.s32 %s168, 1
      %s170 = scalar_select %p167, %s168, %s169
      %p173 = pneg %p167
      %p174 = scmp.eq.s32.totalorder %s21, 3
      %p175 = por %p173, %p174
      %p176 = scmp.ne.s32.totalorder %s168, %s171
      %p177 = scmp.eq.s32.totalorder %s21, 0
      %p178 = por %p176, %p177
      %p179 = scmp.ne.s32.totalorder %s168, %s171
      %p180 = scmp.eq.s32.totalorder %s26, 3
      %p181 = por %p179, %p180
      %p182 = scmp.ne.s32.totalorder %s171, %s172
      %p183 = scmp.eq.s32.totalorder %s26, 0
      %p184 = por %p182, %p183
      %p185 = scmp.ne.s32.totalorder %s171, %s172
      %p186 = scmp.eq.s32.totalorder %s27, 3
      %p187 = por %p185, %p186
      %p189 = scmp.ne.s32.totalorder %s172, %s188
      %p190 = scmp.eq.s32.totalorder %s27, 0
      %p191 = por %p189, %p190
      %s192 = ssub.s32 %s29, %s36
      %p193 = scmp.eq.s32.totalorder %s192, 0
      %s195 = sadd.s32 %s194, 1
      %s196 = scalar_select %p193, %s194, %s195
      %p199 = pneg %p193
      %p200 = scmp.eq.s32.totalorder %s21, 3
      %p201 = por %p199, %p200
      %p202 = scmp.ne.s32.totalorder %s194, %s197
      %p203 = scmp.eq.s32.totalorder %s21, 0
      %p204 = por %p202, %p203
      %p205 = scmp.ne.s32.totalorder %s194, %s197
      %p206 = scmp.eq.s32.totalorder %s26, 3
      %p207 = por %p205, %p206
      %p208 = scmp.ne.s32.totalorder %s197, %s198
      %p209 = scmp.eq.s32.totalorder %s26, 0
      %p210 = por %p208, %p209
      %p211 = scmp.ne.s32.totalorder %s197, %s198
      %p212 = scmp.eq.s32.totalorder %s27, 3
      %p213 = por %p211, %p212
      %p215 = scmp.ne.s32.totalorder %s198, %s214
      %p216 = scmp.eq.s32.totalorder %s27, 0
      %p217 = por %p215, %p216
      %s218 = ssub.s32 %s29, %s36
      %p219 = scmp.eq.s32.totalorder %s218, 0
      %s221 = sadd.s32 %s220, 1
      %s222 = scalar_select %p219, %s220, %s221
      %p225 = pneg %p219
      %p226 = scmp.eq.s32.totalorder %s21, 3
      %p227 = por %p225, %p226
      %p228 = scmp.ne.s32.totalorder %s220, %s223
      %p229 = scmp.eq.s32.totalorder %s21, 0
      %p230 = por %p228, %p229
      %p231 = scmp.ne.s32.totalorder %s220, %s223
      %p232 = scmp.eq.s32.totalorder %s26, 3
      %p233 = por %p231, %p232
      %p234 = scmp.ne.s32.totalorder %s223, %s224
      %p235 = scmp.eq.s32.totalorder %s26, 0
      %p236 = por %p234, %p235
      %p237 = scmp.ne.s32.totalorder %s223, %s224
      %p238 = scmp.eq.s32.totalorder %s27, 3
      %p239 = por %p237, %p238
      %p241 = scmp.ne.s32.totalorder %s224, %s240
      %p242 = scmp.eq.s32.totalorder %s27, 0
      %p243 = por %p241, %p242
      %s244 = ssub.s32 %s28, %s40
      %s245 = ssub.s32 %s29, %s36
      %s246 = sor.u32 %s244, %s245
      %p247 = scmp.eq.s32.totalorder %s246, 0
      %s249 = sadd.s32 %s248, 1
      %s250 = scalar_select %p247, %s248, %s249
      %p253 = pneg %p247
      %p254 = scmp.eq.s32.totalorder %s21, 3
      %p255 = por %p253, %p254
      %p256 = scmp.ne.s32.totalorder %s248, %s251
      %p257 = scmp.eq.s32.totalorder %s21, 0
      %p258 = por %p256, %p257
      %p259 = scmp.ne.s32.totalorder %s248, %s251
      %p260 = scmp.eq.s32.totalorder %s26, 3
      %p261 = por %p259, %p260
      %p262 = scmp.ne.s32.totalorder %s251, %s252
      %p263 = scmp.eq.s32.totalorder %s26, 0
      %p264 = por %p262, %p263
      %p265 = scmp.ne.s32.totalorder %s251, %s252
      %p266 = scmp.eq.s32.totalorder %s27, 3
      %p267 = por %p265, %p266
      %p269 = scmp.ne.s32.totalorder %s252, %s268
      %p270 = scmp.eq.s32.totalorder %s27, 0
      %p271 = por %p269, %p270
      %p272 = scmp.le.s32.totalorder 1, %s21
      %p273 = scmp.lt.s32.totalorder %s21, 5
      %p274 = pnand %p272, %p273
      %p275 = pneg %p274
      // Predicated region
      $region9: #{tpu_custom_call.1} parent=5 // pred_check
        _
      $region10: #{tpu_custom_call.1} parent=5 // pred_check_branch
        %277 = sbr.rel (%p274) target = $region12
      $region11: #{tpu_custom_call.1} parent=5 // pred_region
        %s278 = ssub.s32 %s21, 1
        // Predicated region
        $region13: #{tpu_custom_call.1} parent=11 // pred_check
          %p279 = pneg %p106
        $region14: #{tpu_custom_call.1} parent=11 // pred_check_branch
          %281 = sbr.rel (%p279) target = $region16
        $region15: #{tpu_custom_call.1} parent=11 // pred_region
          %283 = vsyncadd [#allocation7], 0
          %s285 = sshll.u32 %s2, 4
          %s286 = int_to_ptr.hbm [resolvable:$true] %s285
          %s287 = sshll.u32 [#allocation6], 4
          %s288 = int_to_ptr.vmem [resolvable:$true] %s287
          %290 = dma.hbm_to_vmem [thread:$0]  %s286, 32, %s288, [#allocation7]
        $region16: #{tpu_custom_call.1} parent=11 // pred_fallthru
          _
      $region12: #{tpu_custom_call.1} parent=5 // pred_fallthru
        _
      %p291 = scmp.lt.s32.totalorder %s21, 4
      // Predicated region
      $region17: #{tpu_custom_call.1} parent=5 // pred_check
        %p292 = pneg %p291
      $region18: #{tpu_custom_call.1} parent=5 // pred_check_branch
        %294 = sbr.rel (%p292) target = $region20
      $region19: #{tpu_custom_call.1} parent=5 // pred_region
        // Predicated region
        $region21: #{tpu_custom_call.1} parent=19 // pred_check
          %p295 = pneg %p53
        $region22: #{tpu_custom_call.1} parent=19 // pred_check_branch
          %297 = sbr.rel (%p295) target = $region24
        $region23: #{tpu_custom_call.1} parent=19 // pred_region
          %s298 = sand.u32 %s21, 1
          %s299 = scalar_lea.sflag [#allocation4], %s298
          %s300 = sand.u32 %s43, 1
          %s301 = smul.addr %s300, 8
          %s302 = scalar_lea.vmem [#allocation3], %s301
          %304 = vsyncadd %s299, 0
          %s305 = smul.addr %s28, 8
          %s306 = scalar_lea.hbm %s0, %s305
          %s308 = sshll.u32 %s306, 4
          %s309 = int_to_ptr.hbm [resolvable:$true] %s308
          %s310 = sshll.u32 %s302, 4
          %s311 = int_to_ptr.vmem [resolvable:$true] %s310
          %313 = dma.hbm_to_vmem [thread:$0]  %s309, 128, %s311, %s299
        $region24: #{tpu_custom_call.1} parent=19 // pred_fallthru
          _
        // Predicated region
        $region25: #{tpu_custom_call.1} parent=19 // pred_check
          %p314 = pneg %p79
        $region26: #{tpu_custom_call.1} parent=19 // pred_check_branch
          %316 = sbr.rel (%p314) target = $region28
        $region27: #{tpu_custom_call.1} parent=19 // pred_region
          %p317 = scmp.lt.s32.totalorder %s28, 1
          %s318 = scalar_select %p317, %s28, 1
          %s319 = scalar_lea.vmem %s1, %s318
        $region28: #{tpu_custom_call.1} parent=19 // pred_fallthru
          _
        // Predicated region
        $region29: #{tpu_custom_call.1} parent=19 // pred_check
          %p320 = pneg %p126
        $region30: #{tpu_custom_call.1} parent=19 // pred_check_branch
          %322 = sbr.rel (%p320) target = $region32
        $region31: #{tpu_custom_call.1} parent=19 // pred_region
          %p323 = scmp.lt.s32.totalorder %s29, 1
          %s324 = scalar_select %p323, %s29, 1
          %s325 = smul.addr %s324, 16
          %s326 = smul.addr %s325, 4
          %s327 = scalar_lea.vmem %s3, %s326
        $region32: #{tpu_custom_call.1} parent=19 // pred_fallthru
          _
        // Predicated region
        $region33: #{tpu_custom_call.1} parent=19 // pred_check
          %p328 = pneg %p152
        $region34: #{tpu_custom_call.1} parent=19 // pred_check_branch
          %330 = sbr.rel (%p328) target = $region36
        $region35: #{tpu_custom_call.1} parent=19 // pred_region
          %p331 = scmp.lt.s32.totalorder %s29, 1
          %s332 = scalar_select %p331, %s29, 1
          %s333 = smul.addr %s332, 8
          %s334 = smul.addr %s333, 4
          %s335 = scalar_lea.vmem %s4, %s334
        $region36: #{tpu_custom_call.1} parent=19 // pred_fallthru
          _
        // Predicated region
        $region37: #{tpu_custom_call.1} parent=19 // pred_check
          %p336 = pneg %p178
        $region38: #{tpu_custom_call.1} parent=19 // pred_check_branch
          %338 = sbr.rel (%p336) target = $region40
        $region39: #{tpu_custom_call.1} parent=19 // pred_region
          %s339 = sand.u32 %s21, 1
          %s340 = scalar_lea.sflag [#allocation4], %s339
          %s341 = sand.u32 %s168, 1
          %s342 = smul.addr %s341, 32
          %s343 = scalar_lea.vmem [#allocation8], %s342
          %345 = vsyncadd %s340, 0
          %s346 = smul.addr %s29, 8
          %s347 = smul.addr %s346, 4
          %s348 = scalar_lea.hbm %s5, %s347
          %s349 = sshll.u32 %s348, 4
          %s350 = int_to_ptr.hbm [resolvable:$true] %s349
          %s351 = sshll.u32 %s343, 4
          %s352 = int_to_ptr.vmem [resolvable:$true] %s351
          %357 = dma.hbm_to_vmem [thread:$0]  %s350, 512, %s352, %s340, 64, 64, 4
        $region40: #{tpu_custom_call.1} parent=19 // pred_fallthru
          _
        // Predicated region
        $region41: #{tpu_custom_call.1} parent=19 // pred_check
          %p358 = pneg %p204
        $region42: #{tpu_custom_call.1} parent=19 // pred_check_branch
          %360 = sbr.rel (%p358) target = $region44
        $region43: #{tpu_custom_call.1} parent=19 // pred_region
          %p361 = scmp.lt.s32.totalorder %s29, 1
          %s362 = scalar_select %p361, %s29, 1
          %s363 = smul.addr %s362, 16
          %s364 = smul.addr %s363, 4
          %s365 = scalar_lea.vmem %s6, %s364
        $region44: #{tpu_custom_call.1} parent=19 // pred_fallthru
          _
        // Predicated region
        $region45: #{tpu_custom_call.1} parent=19 // pred_check
          %p366 = pneg %p230
        $region46: #{tpu_custom_call.1} parent=19 // pred_check_branch
          %368 = sbr.rel (%p366) target = $region48
        $region47: #{tpu_custom_call.1} parent=19 // pred_region
          %s369 = sand.u32 %s21, 1
          %s370 = scalar_lea.sflag [#allocation4], %s369
          %s371 = sand.u32 %s220, 1
          %s372 = smul.addr %s371, 16
          %s373 = scalar_lea.vmem [#allocation9], %s372
          %375 = vsyncadd %s370, 0
          %s376 = smul.addr %s29, 2
          %s377 = smul.addr %s376, 8
          %s378 = scalar_lea.hbm %s7, %s377
          %s380 = sshll.u32 %s378, 4
          %s381 = int_to_ptr.hbm [resolvable:$true] %s380
          %s382 = sshll.u32 %s373, 4
          %s383 = int_to_ptr.vmem [resolvable:$true] %s382
          %385 = dma.hbm_to_vmem [thread:$0]  %s381, 256, %s383, %s370
        $region48: #{tpu_custom_call.1} parent=19 // pred_fallthru
          _
      $region20: #{tpu_custom_call.1} parent=5 // pred_fallthru
        _
      %p386 = scmp.le.s32.totalorder 1, %s21
      %p387 = scmp.lt.s32.totalorder %s21, 5
      %p388 = pnand %p386, %p387
      %p389 = pneg %p388
      // Predicated region
      $region49: #{tpu_custom_call.1} parent=5 // pred_check
        _
      $region50: #{tpu_custom_call.1} parent=5 // pred_check_branch
        %391 = sbr.rel (%p388) target = $region52
      $region51: #{tpu_custom_call.1} parent=5 // pred_region
        %s392 = ssub.s32 %s21, 1
        %s393 = sand.u32 %s26, 1
        %s394 = scalar_lea.sflag [#allocation4], %s393
        %s395 = sand.u32 %s46, 1
        %s396 = smul.addr %s395, 8
        %s397 = scalar_lea.vmem [#allocation3], %s396
        // Predicated region
        $region53: #{tpu_custom_call.1} parent=51 // pred_check
          %p398 = pneg %p59
        $region54: #{tpu_custom_call.1} parent=51 // pred_check_branch
          %400 = sbr.rel (%p398) target = $region56
        $region55: #{tpu_custom_call.1} parent=51 // pred_region
          %402 = dma.done %s394, 128
        $region56: #{tpu_custom_call.1} parent=51 // pred_fallthru
          _
        // Predicated region
        $region57: #{tpu_custom_call.1} parent=51 // pred_check
          %p403 = pneg %p106
        $region58: #{tpu_custom_call.1} parent=51 // pred_check_branch
          %405 = sbr.rel (%p403) target = $region60
        $region59: #{tpu_custom_call.1} parent=51 // pred_region
          %407 = dma.done [#allocation7], 32
        $region60: #{tpu_custom_call.1} parent=51 // pred_fallthru
          _
        %s408 = sand.u32 %s26, 1
        %s409 = scalar_lea.sflag [#allocation4], %s408
        %s410 = sand.u32 %s171, 1
        %s411 = smul.addr %s410, 32
        %s412 = scalar_lea.vmem [#allocation8], %s411
        // Predicated region
        $region61: #{tpu_custom_call.1} parent=51 // pred_check
          %p413 = pneg %p184
        $region62: #{tpu_custom_call.1} parent=51 // pred_check_branch
          %415 = sbr.rel (%p413) target = $region64
        $region63: #{tpu_custom_call.1} parent=51 // pred_region
          %417 = dma.done %s409, 512
        $region64: #{tpu_custom_call.1} parent=51 // pred_fallthru
          _
        %s418 = sand.u32 %s26, 1
        %s419 = scalar_lea.sflag [#allocation4], %s418
        %s420 = sand.u32 %s223, 1
        %s421 = smul.addr %s420, 16
        %s422 = scalar_lea.vmem [#allocation9], %s421
        // Predicated region
        $region65: #{tpu_custom_call.1} parent=51 // pred_check
          %p423 = pneg %p236
        $region66: #{tpu_custom_call.1} parent=51 // pred_check_branch
          %425 = sbr.rel (%p423) target = $region68
        $region67: #{tpu_custom_call.1} parent=51 // pred_region
          %427 = dma.done %s419, 256
        $region68: #{tpu_custom_call.1} parent=51 // pred_fallthru
          _
        %s428 = sand.u32 %s26, 1
        %s429 = scalar_lea.sflag [#allocation4], %s428
        %s430 = sand.u32 %s46, 1
        %s431 = smul.addr %s430, 8
        %s432 = scalar_lea.vmem [#allocation3], %s431
        %p433 = pneg %p59
        %p434 = pneg %p56
        %p435 = scmp.lt.s32.totalorder %s30, 1
        %s436 = scalar_select %p435, %s30, 1
        %s437 = scalar_lea.vmem %s1, %s436
        %p438 = pneg %p85
        %p439 = pneg %p82
        %p440 = pneg %p106
        %p441 = pneg %p103
        %p442 = scmp.lt.s32.totalorder %s31, 1
        %s443 = scalar_select %p442, %s31, 1
        %s444 = smul.addr %s443, 16
        %s445 = smul.addr %s444, 4
        %s446 = scalar_lea.vmem %s3, %s445
        %p447 = pneg %p132
        %p448 = pneg %p129
        %p449 = scmp.lt.s32.totalorder %s31, 1
        %s450 = scalar_select %p449, %s31, 1
        %s451 = smul.addr %s450, 8
        %s452 = smul.addr %s451, 4
        %s453 = scalar_lea.vmem %s4, %s452
        %p454 = pneg %p158
        %p455 = pneg %p155
        %s456 = sand.u32 %s26, 1
        %s457 = scalar_lea.sflag [#allocation4], %s456
        %s458 = sand.u32 %s171, 1
        %s459 = smul.addr %s458, 32
        %s460 = scalar_lea.vmem [#allocation8], %s459
        %p461 = pneg %p184
        %p462 = pneg %p181
        %p463 = scmp.lt.s32.totalorder %s31, 1
        %s464 = scalar_select %p463, %s31, 1
        %s465 = smul.addr %s464, 16
        %s466 = smul.addr %s465, 4
        %s467 = scalar_lea.vmem %s6, %s466
        %p468 = pneg %p210
        %p469 = pneg %p207
        %s470 = sand.u32 %s26, 1
        %s471 = scalar_lea.sflag [#allocation4], %s470
        %s472 = sand.u32 %s223, 1
        %s473 = smul.addr %s472, 16
        %s474 = scalar_lea.vmem [#allocation9], %s473
        %p475 = pneg %p236
        %p476 = pneg %p233
        %p477 = pneg %p264
        %p478 = pneg %p261
        %s479 = sand.u32 %s251, 1
        %s480 = scalar_lea.sflag [#allocation5], %s479
        %s481 = sand.u32 %s251, 1
        %s482 = smul.addr %s481, 32
        %s483 = scalar_lea.vmem [#allocation10], %s482
        %p484 = scmp.lt.s32.totalorder %s30, 1
        %s485 = scalar_select %p484, %s30, 1
        %s486 = scalar_lea.vmem %s1, %s485
        %p487 = scmp.lt.s32.totalorder %s31, 1
        %s488 = scalar_select %p487, %s31, 1
        %s489 = smul.addr %s488, 16
        %s490 = smul.addr %s489, 4
        %s491 = scalar_lea.vmem %s3, %s490
        %p492 = scmp.lt.s32.totalorder %s31, 1
        %s493 = scalar_select %p492, %s31, 1
        %s494 = smul.addr %s493, 8
        %s495 = smul.addr %s494, 4
        %s496 = scalar_lea.vmem %s4, %s495
        %p497 = scmp.lt.s32.totalorder %s31, 1
        %s498 = scalar_select %p497, %s31, 1
        %s499 = smul.addr %s498, 16
        %s500 = smul.addr %s499, 4
        %s501 = scalar_lea.vmem %s6, %s500
        %p503 = scmp.eq.s32.totalorder %s31, 0
        // Predicated region
        $region69: #{tpu_custom_call.1} parent=51 // pred_check
          %p504 = pneg %p503
        $region70: #{tpu_custom_call.1} parent=51 // pred_check_branch
          %506 = sbr.rel (%p504) target = $region72
        $region71: #{tpu_custom_call.1} parent=51 // pred_region
          %v507 = vld [vmem:[%s397] sm:$0xff]
          %v508 = vld [vmem:[#allocation6] sm:$0x1]
          %v509 = vld [vmem:[#allocation6 + $0x1] sm:$0x1]
          %vm510 = vcmask 523264
          %v511 = vsel %vm510, %v507, 0.0
          %512 = vadd.xlane.f32.xlu0 %v511
          %v513 = vpop.xlane.xlu0 %512
          %v514 = vrcp.pop 64.0
          %v515 = vmul.f32 64.0, %v514
          %v516 = vsub.f32 1.0, %v515
          %v517 = vmul.f32 %v514, %v516
          %v518 = vadd.f32 %v514, %v517
          %vm519 = vweird.f32 %v514
          %v520 = vsel %vm519, %v514, %v518
          %v521 = vmul.f32 %v513, %v520
          %v522 = vsub.f32 %v507, %v521
          %v523 = vmul.f32 %v522, %v522
          %v524 = vsel %vm510, %v523, 0.0
          %525 = vadd.xlane.f32.xlu0 %v524
          %v526 = vpop.xlane.xlu0 %525
          %v527 = vmul.f32 %v526, %v520
          %v528 = vadd.f32 %v527, 1e-12
          %v529 = vrsqrt.pop %v528
          %v530 = vmul.f32 %v529, %v528
          %v531 = vmul.f32 %v530, %v529
          %v532 = vmul.f32 0.5, %v531
          %v533 = vsub.f32 1.5, %v532
          %v534 = vmul.f32 %v529, %v533
          %vm535 = vweird.f32 %v528
          %vm536 = vweird.f32 %v529
          %vm537 = vmor %vm535, %vm536
          %v538 = vsel %vm537, %v529, %v534
          %v539 = vmul.f32 %v522, %v538
          %v540 = vperm.slane %v508, 0
          %v541 = vmul.f32 %v539, %v540
          %v542 = vperm.slane %v509, 0
          %v543 = vadd.f32 %v541, %v542
          %544 = vst.msk [vmem:[#allocation2] sm:$0xff] %vm510, %v543
        $region72: #{tpu_custom_call.1} parent=51 // pred_fallthru
          _
        %v545 = vld [vmem:[#allocation2] sm:$0xff]
        %v546 = vld [vmem:[%s486] sm:$0x1]
        %v547 = vld [vmem:[%s422] sm:$0xff]
        %v548 = vld [vmem:[%s422 + $0x8] sm:$0xff]
        %v549 = vpack.c.bf16 %v545, %v545
        %v550 = vld [vmem:[%s491] sm:$0xff]
        %v551 = vld [vmem:[%s491 + $0x8] sm:$0xff]
        %v552 = vld [vmem:[%s491 + $0x10] sm:$0xff]
        %v553 = vld [vmem:[%s491 + $0x18] sm:$0xff]
        %v554 = vld [vmem:[%s491 + $0x20] sm:$0xff]
        %v555 = vld [vmem:[%s491 + $0x28] sm:$0xff]
        %v556 = vld [vmem:[%s491 + $0x30] sm:$0xff]
        %v557 = vld [vmem:[%s491 + $0x38] sm:$0xff]
        %v558 = vperm.slane %v547, 0
        %v559 = vperm.slane %v548, 0
        %v568 = vunpack.c.l.b16 %v550
        %v569 = vunpack.c.h.b16 %v550
        %v570 = vunpack.c.l.b16 %v551
        %v571 = vunpack.c.h.b16 %v551
        %v572 = vunpack.c.l.b16 %v552
        %v573 = vunpack.c.h.b16 %v552
        %v574 = vunpack.c.l.b16 %v553
        %v575 = vunpack.c.h.b16 %v553
        %v576 = vunpack.c.l.b16 %v554
        %v577 = vunpack.c.h.b16 %v554
        %v578 = vunpack.c.l.b16 %v555
        %v579 = vunpack.c.h.b16 %v555
        %v580 = vunpack.c.l.b16 %v556
        %v581 = vunpack.c.h.b16 %v556
        %v582 = vunpack.c.l.b16 %v557
        %v583 = vunpack.c.h.b16 %v557
        %v584 = vpack.c.b16 %v570, %v568
        %v585 = vpack.c.b16 %v571, %v569
        %v586 = vpack.c.b16 %v574, %v572
        %v587 = vpack.c.b16 %v575, %v573
        %v588 = vpack.c.b16 %v578, %v576
        %v589 = vpack.c.b16 %v579, %v577
        %v590 = vpack.c.b16 %v582, %v580
        %v591 = vpack.c.b16 %v583, %v581
        %vm600 = vcmask 523264
        %v602 = vsel %vm600, %v549, 0
        %604 = vmatpush.bf16.msra.mxu0 0
        %605 = vmatpush.bf16.msra.mxu0 0
        %606 = vmatpush.bf16.msra.mxu0 0
        %607 = vmatpush.bf16.msra.mxu0 0
        %608 = vmatpush.bf16.msra.mxu0 %v590
        %609 = vmatpush.bf16.msra.mxu0 %v588
        %610 = vmatpush.bf16.msra.mxu0 %v586
        %611 = vmatpush.bf16.msra.mxu0 %v584
        %612 = vmatmul.bf16.gmra.mxu0 %v602
        %v613 = vpop.f32.mrf.mxu0
        %v614 = vadd.f32 %v558, %v613
        %v615 = vpop.f32.mrf.mxu0
        %616 = vdwg.mxu0
        %617 = vmatpush.bf16.msra.mxu0 0
        %618 = vmatpush.bf16.msra.mxu0 0
        %619 = vmatpush.bf16.msra.mxu0 0
        %620 = vmatpush.bf16.msra.mxu0 0
        %621 = vmatpush.bf16.msra.mxu0 %v591
        %622 = vmatpush.bf16.msra.mxu0 %v589
        %623 = vmatpush.bf16.msra.mxu0 %v587
        %624 = vmatpush.bf16.msra.mxu0 %v585
        %625 = vmatmul.bf16.gmra.mxu0 %v602
        %v626 = vpop.f32.mrf.mxu0
        %v627 = vadd.f32 %v559, %v626
        %v628 = vpop.f32.mrf.mxu0
        %629 = vdwg.mxu0
        %631 = vrot.lane.b32.xlu0 %v614, 112
        %v632 = vpop.permute.xlu0 %631
        %634 = vrot.lane.b32.xlu0 %v614, 96
        %v635 = vpop.permute.xlu0 %634
        %637 = vrot.lane.b32.xlu0 %v614, 80
        %v638 = vpop.permute.xlu0 %637
        %v640 = vpack.c.bf16 %v614, %v614
        %v641 = vpack.c.bf16 %v632, %v632
        %v642 = vpack.c.bf16 %v635, %v635
        %v643 = vpack.c.bf16 %v638, %v638
        %645 = vrot.lane.b32.xlu0 %v627, 112
        %v646 = vpop.permute.xlu0 %645
        %648 = vrot.lane.b32.xlu0 %v627, 96
        %v649 = vpop.permute.xlu0 %648
        %651 = vrot.lane.b32.xlu0 %v627, 80
        %v652 = vpop.permute.xlu0 %651
        %v654 = vpack.c.bf16 %v627, %v627
        %v655 = vpack.c.bf16 %v646, %v646
        %v656 = vpack.c.bf16 %v649, %v649
        %v657 = vpack.c.bf16 %v652, %v652
        %v659 = vunpack.c.l.b16 %v640
        %v660 = vpack.c.b16 %v659, %v659
        %661 = vrot.lane.b32.xlu0 %v660, 64
        %v662 = vpop.permute.xlu0 %661
        %vm663 = vcmask 130048
        %v665 = vsel %vm663, %v640, 0
        %v668 = vsel %vm663, %v662, 0
        %670 = vmatpush.bf16.xpose.msra.mxu0 0
        %671 = vmatpush.bf16.xpose.msra.mxu0 0
        %672 = vmatpush.bf16.xpose.msra.mxu0 0
        %673 = vmatpush.bf16.xpose.msra.mxu0 0
        %674 = vmatpush.bf16.xpose.msra.mxu0 0
        %675 = vmatpush.bf16.xpose.msra.mxu0 0
        %676 = vmatpush.bf16.xpose.msra.mxu0 0
        %677 = vmatpush.bf16.xpose.msra.mxu0 %v668
        %678 = vmatmul.bf16.gmra.mxu0 %v665
        %v679 = vpop.f32.mrf.mxu0
        %v680 = vadd.f32 0.0, %v679
        %v681 = vpop.f32.mrf.mxu0
        %682 = vdwg.mxu0
        %v684 = vunpack.c.l.b16 %v641
        %v685 = vpack.c.b16 %v684, %v684
        %686 = vrot.lane.b32.xlu0 %v685, 64
        %v687 = vpop.permute.xlu0 %686
        %v689 = vsel %vm663, %v641, 0
        %v692 = vsel %vm663, %v687, 0
        %694 = vmatpush.bf16.xpose.msra.mxu0 0
        %695 = vmatpush.bf16.xpose.msra.mxu0 0
        %696 = vmatpush.bf16.xpose.msra.mxu0 0
        %697 = vmatpush.bf16.xpose.msra.mxu0 0
        %698 = vmatpush.bf16.xpose.msra.mxu0 0
        %699 = vmatpush.bf16.xpose.msra.mxu0 0
        %700 = vmatpush.bf16.xpose.msra.mxu0 0
        %701 = vmatpush.bf16.xpose.msra.mxu0 %v692
        %702 = vmatmul.bf16.gmra.mxu0 %v689
        %v703 = vpop.f32.mrf.mxu0
        %v704 = vadd.f32 0.0, %v703
        %v705 = vpop.f32.mrf.mxu0
        %706 = vdwg.mxu0
        %v708 = vunpack.c.l.b16 %v642
        %v709 = vpack.c.b16 %v708, %v708
        %710 = vrot.lane.b32.xlu0 %v709, 64
        %v711 = vpop.permute.xlu0 %710
        %v713 = vsel %vm663, %v642, 0
        %v716 = vsel %vm663, %v711, 0
        %718 = vmatpush.bf16.xpose.msra.mxu0 0
        %719 = vmatpush.bf16.xpose.msra.mxu0 0
        %720 = vmatpush.bf16.xpose.msra.mxu0 0
        %721 = vmatpush.bf16.xpose.msra.mxu0 0
        %722 = vmatpush.bf16.xpose.msra.mxu0 0
        %723 = vmatpush.bf16.xpose.msra.mxu0 0
        %724 = vmatpush.bf16.xpose.msra.mxu0 0
        %725 = vmatpush.bf16.xpose.msra.mxu0 %v716
        %726 = vmatmul.bf16.gmra.mxu0 %v713
        %v727 = vpop.f32.mrf.mxu0
        %v728 = vadd.f32 0.0, %v727
        %v729 = vpop.f32.mrf.mxu0
        %730 = vdwg.mxu0
        %v732 = vunpack.c.l.b16 %v643
        %v733 = vpack.c.b16 %v732, %v732
        %734 = vrot.lane.b32.xlu0 %v733, 64
        %v735 = vpop.permute.xlu0 %734
        %v737 = vsel %vm663, %v643, 0
        %v740 = vsel %vm663, %v735, 0
        %742 = vmatpush.bf16.xpose.msra.mxu0 0
        %743 = vmatpush.bf16.xpose.msra.mxu0 0
        %744 = vmatpush.bf16.xpose.msra.mxu0 0
        %745 = vmatpush.bf16.xpose.msra.mxu0 0
        %746 = vmatpush.bf16.xpose.msra.mxu0 0
        %747 = vmatpush.bf16.xpose.msra.mxu0 0
        %748 = vmatpush.bf16.xpose.msra.mxu0 0
        %749 = vmatpush.bf16.xpose.msra.mxu0 %v740
        %750 = vmatmul.bf16.gmra.mxu0 %v737
        %v751 = vpop.f32.mrf.mxu0
        %v752 = vadd.f32 0.0, %v751
        %v753 = vpop.f32.mrf.mxu0
        %754 = vdwg.mxu0
        %v755 = vmul.f32 %v680, 0.25
        %v756 = vmul.f32 %v704, 0.25
        %v757 = vmul.f32 %v728, 0.25
        %v758 = vmul.f32 %v752, 0.25
        %v760 = vperm.slane %v546, 0
        %v762 = vadd.f32 %v755, %v760
        %v763 = vadd.f32 %v756, %v760
        %v764 = vadd.f32 %v757, %v760
        %v765 = vadd.f32 %v758, %v760
        %vm766 = vcmask 64512
        %v767 = vsel %vm766, %v762, -inf
        %768 = vmax.xlane.f32.xlu0 %v767
        %v769 = vpop.xlane.xlu0 %768
        %v770 = vsel %vm766, %v763, -inf
        %771 = vmax.xlane.f32.xlu0 %v770
        %v772 = vpop.xlane.xlu0 %771
        %v773 = vsel %vm766, %v764, -inf
        %774 = vmax.xlane.f32.xlu0 %v773
        %v775 = vpop.xlane.xlu0 %774
        %v776 = vsel %vm766, %v765, -inf
        %777 = vmax.xlane.f32.xlu0 %v776
        %v778 = vpop.xlane.xlu0 %777
        %v779 = vsub.f32 %v762, %v769
        %v780 = vsub.f32 %v763, %v772
        %v781 = vsub.f32 %v764, %v775
        %v782 = vsub.f32 %v765, %v778
        %v783 = vmul.f32 %v779, 1.442695
        %v784 = vpow.pop %v783
        %v785 = vmul.f32 %v780, 1.442695
        %v786 = vpow.pop %v785
        %v787 = vmul.f32 %v781, 1.442695
        %v788 = vpow.pop %v787
        %v789 = vmul.f32 %v782, 1.442695
        %v790 = vpow.pop %v789
        %v791 = vsel %vm766, %v784, 0.0
        %792 = vadd.xlane.f32.xlu0 %v791
        %v793 = vpop.xlane.xlu0 %792
        %v794 = vsel %vm766, %v786, 0.0
        %795 = vadd.xlane.f32.xlu0 %v794
        %v796 = vpop.xlane.xlu0 %795
        %v797 = vsel %vm766, %v788, 0.0
        %798 = vadd.xlane.f32.xlu0 %v797
        %v799 = vpop.xlane.xlu0 %798
        %v800 = vsel %vm766, %v790, 0.0
        %801 = vadd.xlane.f32.xlu0 %v800
        %v802 = vpop.xlane.xlu0 %801
        %v803 = vrcp.pop %v793
        %v804 = vmul.f32 %v793, %v803
        %v805 = vsub.f32 1.0, %v804
        %v806 = vmul.f32 %v803, %v805
        %v807 = vadd.f32 %v803, %v806
        %vm808 = vweird.f32 %v793
        %vm809 = vweird.f32 %v803
        %vm810 = vmor %vm808, %vm809
        %v811 = vsel %vm810, %v803, %v807
        %v812 = vand.u32 2147483647, %v793
        %vm813 = vcmp.eq.f32.partialorder %v812, 8.507059e+37
        %v814 = vand.u32 %v793, 2147483648
        %v815 = vor.u32 1.1754944e-38, %v814
        %v816 = vsel %vm813, %v815, %v811
        %v817 = vmul.f32 %v784, %v816
        %v818 = vrcp.pop %v796
        %v819 = vmul.f32 %v796, %v818
        %v820 = vsub.f32 1.0, %v819
        %v821 = vmul.f32 %v818, %v820
        %v822 = vadd.f32 %v818, %v821
        %vm823 = vweird.f32 %v796
        %vm824 = vweird.f32 %v818
        %vm825 = vmor %vm823, %vm824
        %v826 = vsel %vm825, %v818, %v822
        %v827 = vand.u32 2147483647, %v796
        %vm828 = vcmp.eq.f32.partialorder %v827, 8.507059e+37
        %v829 = vand.u32 %v796, 2147483648
        %v830 = vor.u32 1.1754944e-38, %v829
        %v831 = vsel %vm828, %v830, %v826
        %v832 = vmul.f32 %v786, %v831
        %v833 = vrcp.pop %v799
        %v834 = vmul.f32 %v799, %v833
        %v835 = vsub.f32 1.0, %v834
        %v836 = vmul.f32 %v833, %v835
        %v837 = vadd.f32 %v833, %v836
        %vm838 = vweird.f32 %v799
        %vm839 = vweird.f32 %v833
        %vm840 = vmor %vm838, %vm839
        %v841 = vsel %vm840, %v833, %v837
        %v842 = vand.u32 2147483647, %v799
        %vm843 = vcmp.eq.f32.partialorder %v842, 8.507059e+37
        %v844 = vand.u32 %v799, 2147483648
        %v845 = vor.u32 1.1754944e-38, %v844
        %v846 = vsel %vm843, %v845, %v841
        %v847 = vmul.f32 %v788, %v846
        %v848 = vrcp.pop %v802
        %v849 = vmul.f32 %v802, %v848
        %v850 = vsub.f32 1.0, %v849
        %v851 = vmul.f32 %v848, %v850
        %v852 = vadd.f32 %v848, %v851
        %vm853 = vweird.f32 %v802
        %vm854 = vweird.f32 %v848
        %vm855 = vmor %vm853, %vm854
        %v856 = vsel %vm855, %v848, %v852
        %v857 = vand.u32 2147483647, %v802
        %vm858 = vcmp.eq.f32.partialorder %v857, 8.507059e+37
        %v859 = vand.u32 %v802, 2147483648
        %v860 = vor.u32 1.1754944e-38, %v859
        %v861 = vsel %vm858, %v860, %v856
        %v862 = vmul.f32 %v790, %v861
        %v863 = vsel %vm766, %v817, 0.0
        %v864 = vsel %vm766, %v832, 0.0
        %v865 = vsel %vm766, %v847, 0.0
        %v866 = vsel %vm766, %v862, 0.0
        %867 = vst [vmem:[%s483] sm:$0xff] %v863
        %868 = vst [vmem:[%s483 + $0x8] sm:$0xff] %v864
        %869 = vst [vmem:[%s483 + $0x10] sm:$0xff] %v865
        %870 = vst [vmem:[%s483 + $0x18] sm:$0xff] %v866
        %v871 = vpack.c.bf16 %v817, %v817
        %v872 = vpack.c.bf16 %v832, %v832
        %v873 = vpack.c.bf16 %v847, %v847
        %v874 = vpack.c.bf16 %v862, %v862
        %v876 = vsel %vm766, %v871, 0
        %vm878 = vcmask 1043456
        %v880 = vsel %vm878, %v654, 0
        %882 = vmatpush.bf16.msra.mxu0 0
        %883 = vmatpush.bf16.msra.mxu0 0
        %884 = vmatpush.bf16.msra.mxu0 0
        %885 = vmatpush.bf16.msra.mxu0 0
        %886 = vmatpush.bf16.msra.mxu0 0
        %887 = vmatpush.bf16.msra.mxu0 0
        %888 = vmatpush.bf16.msra.mxu0 0
        %889 = vmatpush.bf16.msra.mxu0 %v880
        %890 = vmatmul.bf16.gmra.mxu0 %v876
        %v891 = vpop.f32.mrf.mxu0
        %v892 = vadd.f32 0.0, %v891
        %v893 = vpop.f32.mrf.mxu0
        %894 = vdwg.mxu0
        %v896 = vsel %vm766, %v872, 0
        %v899 = vsel %vm878, %v655, 0
        %901 = vmatpush.bf16.msra.mxu0 0
        %902 = vmatpush.bf16.msra.mxu0 0
        %903 = vmatpush.bf16.msra.mxu0 0
        %904 = vmatpush.bf16.msra.mxu0 0
        %905 = vmatpush.bf16.msra.mxu0 0
        %906 = vmatpush.bf16.msra.mxu0 0
        %907 = vmatpush.bf16.msra.mxu0 0
        %908 = vmatpush.bf16.msra.mxu0 %v899
        %909 = vmatmul.bf16.gmra.mxu0 %v896
        %v910 = vpop.f32.mrf.mxu0
        %v911 = vadd.f32 0.0, %v910
        %v912 = vpop.f32.mrf.mxu0
        %913 = vdwg.mxu0
        %v915 = vsel %vm766, %v873, 0
        %v918 = vsel %vm878, %v656, 0
        %920 = vmatpush.bf16.msra.mxu0 0
        %921 = vmatpush.bf16.msra.mxu0 0
        %922 = vmatpush.bf16.msra.mxu0 0
        %923 = vmatpush.bf16.msra.mxu0 0
        %924 = vmatpush.bf16.msra.mxu0 0
        %925 = vmatpush.bf16.msra.mxu0 0
        %926 = vmatpush.bf16.msra.mxu0 0
        %927 = vmatpush.bf16.msra.mxu0 %v918
        %928 = vmatmul.bf16.gmra.mxu0 %v915
        %v929 = vpop.f32.mrf.mxu0
        %v930 = vadd.f32 0.0, %v929
        %v931 = vpop.f32.mrf.mxu0
        %932 = vdwg.mxu0
        %v934 = vsel %vm766, %v874, 0
        %v937 = vsel %vm878, %v657, 0
        %939 = vmatpush.bf16.msra.mxu0 0
        %940 = vmatpush.bf16.msra.mxu0 0
        %941 = vmatpush.bf16.msra.mxu0 0
        %942 = vmatpush.bf16.msra.mxu0 0
        %943 = vmatpush.bf16.msra.mxu0 0
        %944 = vmatpush.bf16.msra.mxu0 0
        %945 = vmatpush.bf16.msra.mxu0 0
        %946 = vmatpush.bf16.msra.mxu0 %v937
        %947 = vmatmul.bf16.gmra.mxu0 %v934
        %v948 = vpop.f32.mrf.mxu0
        %v949 = vadd.f32 0.0, %v948
        %v950 = vpop.f32.mrf.mxu0
        %951 = vdwg.mxu0
        %953 = vrot.lane.b32.xlu0 %v911, 16
        %v954 = vpop.permute.xlu0 %953
        %957 = vrot.lane.b32.xlu0 %v930, 32
        %v958 = vpop.permute.xlu0 %957
        %961 = vrot.lane.b32.xlu0 %v949, 48
        %v962 = vpop.permute.xlu0 %961
        %v964 = vsel %vm663, %v892, %v954
        %vm965 = vcmask 261120
        %v966 = vsel %vm965, %v964, %v958
        %vm967 = vcmask 392192
        %v968 = vsel %vm967, %v966, %v962
        %v969 = vpack.c.bf16 %v968, %v968
        %v970 = vld [vmem:[%s496] sm:$0xf]
        %v971 = vld [vmem:[%s496 + $0x4] sm:$0xf]
        %v972 = vld [vmem:[%s496 + $0x8] sm:$0xf]
        %v973 = vld [vmem:[%s496 + $0xc] sm:$0xf]
        %v974 = vld [vmem:[%s496 + $0x10] sm:$0xf]
        %v975 = vld [vmem:[%s496 + $0x14] sm:$0xf]
        %v976 = vld [vmem:[%s496 + $0x18] sm:$0xf]
        %v977 = vld [vmem:[%s496 + $0x1c] sm:$0xf]
        %v978 = vperm.slane %v547, 1
        %v987 = vunpack.c.l.b16 %v970
        %v988 = vunpack.c.l.b16 %v971
        %v989 = vunpack.c.l.b16 %v972
        %v990 = vunpack.c.l.b16 %v973
        %v991 = vunpack.c.l.b16 %v974
        %v992 = vunpack.c.l.b16 %v975
        %v993 = vunpack.c.l.b16 %v976
        %v994 = vunpack.c.l.b16 %v977
        %v995 = vpack.c.b16 %v988, %v987
        %v996 = vpack.c.b16 %v990, %v989
        %v997 = vpack.c.b16 %v992, %v991
        %v998 = vpack.c.b16 %v994, %v993
        %v1004 = vsel %vm600, %v969, 0
        %1006 = vmatpush.bf16.msra.mxu0 0
        %1007 = vmatpush.bf16.msra.mxu0 0
        %1008 = vmatpush.bf16.msra.mxu0 0
        %1009 = vmatpush.bf16.msra.mxu0 0
        %1010 = vmatpush.bf16.msra.mxu0 %v998
        %1011 = vmatpush.bf16.msra.mxu0 %v997
        %1012 = vmatpush.bf16.msra.mxu0 %v996
        %1013 = vmatpush.bf16.msra.mxu0 %v995
        %1014 = vmatmul.bf16.gmra.mxu0 %v1004
        %v1015 = vpop.f32.mrf.mxu0
        %v1016 = vadd.f32 %v978, %v1015
        %v1017 = vpop.f32.mrf.mxu0
        %1018 = vdwg.mxu0
        %v1019 = vadd.f32 %v1016, %v545
        %v1020 = vsel %vm600, %v1019, 0.0
        %1021 = vadd.xlane.f32.xlu0 %v1020
        %v1022 = vpop.xlane.xlu0 %1021
        %v1023 = vrcp.pop 64.0
        %v1024 = vmul.f32 64.0, %v1023
        %v1025 = vsub.f32 1.0, %v1024
        %v1026 = vmul.f32 %v1023, %v1025
        %v1027 = vadd.f32 %v1023, %v1026
        %vm1028 = vweird.f32 %v1023
        %v1029 = vsel %vm1028, %v1023, %v1027
        %v1030 = vmul.f32 %v1022, %v1029
        %v1031 = vsub.f32 %v1019, %v1030
        %v1032 = vmul.f32 %v1031, %v1031
        %v1033 = vsel %vm600, %v1032, 0.0
        %1034 = vadd.xlane.f32.xlu0 %v1033
        %v1035 = vpop.xlane.xlu0 %1034
        %v1036 = vmul.f32 %v1035, %v1029
        %v1037 = vadd.f32 %v1036, 1e-12
        %v1038 = vrsqrt.pop %v1037
        %v1039 = vmul.f32 %v1038, %v1037
        %v1040 = vmul.f32 %v1039, %v1038
        %v1041 = vmul.f32 0.5, %v1040
        %v1042 = vsub.f32 1.5, %v1041
        %v1043 = vmul.f32 %v1038, %v1042
        %vm1044 = vweird.f32 %v1037
        %vm1045 = vweird.f32 %v1038
        %vm1046 = vmor %vm1044, %vm1045
        %v1047 = vsel %vm1046, %v1038, %v1043
        %v1048 = vmul.f32 %v1031, %v1047
        %v1049 = vperm.slane %v547, 2
        %v1050 = vmul.f32 %v1048, %v1049
        %v1051 = vperm.slane %v547, 3
        %v1052 = vadd.f32 %v1050, %v1051
        %v1053 = vpack.c.bf16 %v1052, %v1052
        %v1054 = vld [vmem:[%s412] sm:$0xf]
        %v1055 = vld [vmem:[%s412 + $0x4] sm:$0xf]
        %v1056 = vld [vmem:[%s412 + $0x8] sm:$0xf]
        %v1057 = vld [vmem:[%s412 + $0xc] sm:$0xf]
        %v1058 = vld [vmem:[%s412 + $0x10] sm:$0xf]
        %v1059 = vld [vmem:[%s412 + $0x14] sm:$0xf]
        %v1060 = vld [vmem:[%s412 + $0x18] sm:$0xf]
        %v1061 = vld [vmem:[%s412 + $0x1c] sm:$0xf]
        %v1062 = vperm.slane %v547, 4
        %v1071 = vunpack.c.l.b16 %v1054
        %v1072 = vunpack.c.l.b16 %v1055
        %v1073 = vunpack.c.l.b16 %v1056
        %v1074 = vunpack.c.l.b16 %v1057
        %v1075 = vunpack.c.l.b16 %v1058
        %v1076 = vunpack.c.l.b16 %v1059
        %v1077 = vunpack.c.l.b16 %v1060
        %v1078 = vunpack.c.l.b16 %v1061
        %v1079 = vpack.c.b16 %v1072, %v1071
        %v1080 = vpack.c.b16 %v1074, %v1073
        %v1081 = vpack.c.b16 %v1076, %v1075
        %v1082 = vpack.c.b16 %v1078, %v1077
        %v1088 = vsel %vm600, %v1053, 0
        %1090 = vmatpush.bf16.msra.mxu0 0
        %1091 = vmatpush.bf16.msra.mxu0 0
        %1092 = vmatpush.bf16.msra.mxu0 0
        %1093 = vmatpush.bf16.msra.mxu0 0
        %1094 = vmatpush.bf16.msra.mxu0 %v1082
        %1095 = vmatpush.bf16.msra.mxu0 %v1081
        %1096 = vmatpush.bf16.msra.mxu0 %v1080
        %1097 = vmatpush.bf16.msra.mxu0 %v1079
        %1098 = vmatmul.bf16.gmra.mxu0 %v1088
        %v1099 = vpop.f32.mrf.mxu0
        %v1100 = vadd.f32 %v1062, %v1099
        %v1101 = vpop.f32.mrf.mxu0
        %1102 = vdwg.mxu0
        %v1103 = vmul.f32 %v1100, 0.5
        %v1104 = vmul.f32 %v1100, 0.70710677
        %vm1105 = vcmp.ge.f32.partialorder %v1104, 0.0
        %v1106 = vsel %vm1105, 1.0, -1.0
        %v1107 = vand.u32 2147483647, %v1104
        %v1108 = vmul.f32 %v1107, 0.3275911
        %v1109 = vadd.f32 %v1108, 1.0
        %v1110 = vrcp.pop %v1109
        %v1111 = vmul.f32 %v1109, %v1110
        %v1112 = vsub.f32 1.0, %v1111
        %v1113 = vmul.f32 %v1110, %v1112
        %v1114 = vadd.f32 %v1110, %v1113
        %vm1115 = vweird.f32 %v1109
        %vm1116 = vweird.f32 %v1110
        %vm1117 = vmor %vm1115, %vm1116
        %v1118 = vsel %vm1117, %v1110, %v1114
        %v1119 = vand.u32 2147483647, %v1109
        %vm1120 = vcmp.eq.f32.partialorder %v1119, 8.507059e+37
        %v1121 = vand.u32 %v1109, 2147483648
        %v1122 = vor.u32 1.1754944e-38, %v1121
        %v1123 = vsel %vm1120, %v1122, %v1118
        %v1124 = vmul.f32 1.0, %v1123
        %v1125 = vmul.f32 %v1124, 1.0614054
        %v1126 = vadd.f32 %v1125, -1.4531521
        %v1127 = vmul.f32 %v1126, %v1124
        %v1128 = vadd.f32 %v1127, 1.4214138
        %v1129 = vmul.f32 %v1128, %v1124
        %v1130 = vadd.f32 %v1129, -0.28449672
        %v1131 = vmul.f32 %v1130, %v1124
        %v1132 = vadd.f32 %v1131, 0.2548296
        %v1133 = vmul.f32 %v1132, %v1124
        %v1134 = vsub.f32 0.0, %v1107
        %v1135 = vmul.f32 %v1134, %v1107
        %v1136 = vmul.f32 %v1135, 1.442695
        %v1137 = vpow.pop %v1136
        %v1138 = vmul.f32 %v1133, %v1137
        %v1139 = vsub.f32 1.0, %v1138
        %v1140 = vmul.f32 %v1106, %v1139
        %v1141 = vadd.f32 %v1140, 1.0
        %v1142 = vmul.f32 %v1103, %v1141
        %v1143 = vpack.c.bf16 %v1142, %v1142
        %v1144 = vld [vmem:[%s501] sm:$0xf]
        %v1145 = vld [vmem:[%s501 + $0x4] sm:$0xf]
        %v1146 = vld [vmem:[%s501 + $0x8] sm:$0xf]
        %v1147 = vld [vmem:[%s501 + $0xc] sm:$0xf]
        %v1148 = vld [vmem:[%s501 + $0x10] sm:$0xf]
        %v1149 = vld [vmem:[%s501 + $0x14] sm:$0xf]
        %v1150 = vld [vmem:[%s501 + $0x18] sm:$0xf]
        %v1151 = vld [vmem:[%s501 + $0x1c] sm:$0xf]
        %v1152 = vld [vmem:[%s501 + $0x20] sm:$0xf]
        %v1153 = vld [vmem:[%s501 + $0x24] sm:$0xf]
        %v1154 = vld [vmem:[%s501 + $0x28] sm:$0xf]
        %v1155 = vld [vmem:[%s501 + $0x2c] sm:$0xf]
        %v1156 = vld [vmem:[%s501 + $0x30] sm:$0xf]
        %v1157 = vld [vmem:[%s501 + $0x34] sm:$0xf]
        %v1158 = vld [vmem:[%s501 + $0x38] sm:$0xf]
        %v1159 = vld [vmem:[%s501 + $0x3c] sm:$0xf]
        %v1160 = vperm.slane %v547, 5
        %v1177 = vunpack.c.l.b16 %v1144
        %v1178 = vunpack.c.l.b16 %v1145
        %v1179 = vunpack.c.l.b16 %v1146
        %v1180 = vunpack.c.l.b16 %v1147
        %v1181 = vunpack.c.l.b16 %v1148
        %v1182 = vunpack.c.l.b16 %v1149
        %v1183 = vunpack.c.l.b16 %v1150
        %v1184 = vunpack.c.l.b16 %v1151
        %v1185 = vunpack.c.l.b16 %v1152
        %v1186 = vunpack.c.l.b16 %v1153
        %v1187 = vunpack.c.l.b16 %v1154
        %v1188 = vunpack.c.l.b16 %v1155
        %v1189 = vunpack.c.l.b16 %v1156
        %v1190 = vunpack.c.l.b16 %v1157
        %v1191 = vunpack.c.l.b16 %v1158
        %v1192 = vunpack.c.l.b16 %v1159
        %v1193 = vpack.c.b16 %v1178, %v1177
        %v1194 = vpack.c.b16 %v1180, %v1179
        %v1195 = vpack.c.b16 %v1182, %v1181
        %v1196 = vpack.c.b16 %v1184, %v1183
        %v1197 = vpack.c.b16 %v1186, %v1185
        %v1198 = vpack.c.b16 %v1188, %v1187
        %v1199 = vpack.c.b16 %v1190, %v1189
        %v1200 = vpack.c.b16 %v1192, %v1191
        %1209 = vmatpush.bf16.msra.mxu0 %v1200
        %1210 = vmatpush.bf16.msra.mxu0 %v1199
        %1211 = vmatpush.bf16.msra.mxu0 %v1198
        %1212 = vmatpush.bf16.msra.mxu0 %v1197
        %1213 = vmatpush.bf16.msra.mxu0 %v1196
        %1214 = vmatpush.bf16.msra.mxu0 %v1195
        %1215 = vmatpush.bf16.msra.mxu0 %v1194
        %1216 = vmatpush.bf16.msra.mxu0 %v1193
        %1217 = vmatmul.bf16.gmra.mxu0 %v1143
        %v1218 = vpop.f32.mrf.mxu0
        %v1219 = vadd.f32 %v1160, %v1218
        %v1220 = vpop.f32.mrf.mxu0
        %1221 = vdwg.mxu0
        %v1222 = vadd.f32 %v1219, %v1052
        %v1223 = vsel %vm600, %v1222, 0.0
        %1224 = vadd.xlane.f32.xlu0 %v1223
        %v1225 = vpop.xlane.xlu0 %1224
        %v1226 = vmul.f32 %v1225, %v1029
        %v1227 = vsub.f32 %v1222, %v1226
        %v1228 = vmul.f32 %v1227, %v1227
        %v1229 = vsel %vm600, %v1228, 0.0
        %1230 = vadd.xlane.f32.xlu0 %v1229
        %v1231 = vpop.xlane.xlu0 %1230
        %v1232 = vmul.f32 %v1231, %v1029
        %v1233 = vadd.f32 %v1232, 1e-12
        %v1234 = vrsqrt.pop %v1233
        %v1235 = vmul.f32 %v1234, %v1233
        %v1236 = vmul.f32 %v1235, %v1234
        %v1237 = vmul.f32 0.5, %v1236
        %v1238 = vsub.f32 1.5, %v1237
        %v1239 = vmul.f32 %v1234, %v1238
        %vm1240 = vweird.f32 %v1233
        %vm1241 = vweird.f32 %v1234
        %vm1242 = vmor %vm1240, %vm1241
        %v1243 = vsel %vm1242, %v1234, %v1239
        %v1244 = vmul.f32 %v1227, %v1243
        %v1245 = vperm.slane %v547, 6
        %v1246 = vmul.f32 %v1244, %v1245
        %v1247 = vperm.slane %v547, 7
        %v1248 = vadd.f32 %v1246, %v1247
        %1249 = vst.msk [vmem:[#allocation2] sm:$0xff] %vm600, %v1248
        %s1250 = sand.u32 %s251, 1
        %s1251 = scalar_lea.sflag [#allocation5], %s1250
        %s1252 = sand.u32 %s251, 1
        %s1253 = smul.addr %s1252, 32
        %s1254 = scalar_lea.vmem [#allocation10], %s1253
        // Predicated region
        $region73: #{tpu_custom_call.1} parent=51 // pred_check
          %p1255 = pneg %p261
        $region74: #{tpu_custom_call.1} parent=51 // pred_check_branch
          %1257 = sbr.rel (%p1255) target = $region76
        $region75: #{tpu_custom_call.1} parent=51 // pred_region
          %1259 = vsyncadd %s1251, 0
          %s1260 = smul.addr %s31, 4
          %s1261 = smul.addr %s30, 8
          %s1262 = sadd.s32 %s1260, %s1261
          %s1263 = smul.addr %s1262, 8
          %s1264 = scalar_lea.hbm %s8, %s1263
          %s1265 = sshll.u32 %s1254, 4
          %s1266 = int_to_ptr.vmem [resolvable:$true] %s1265
          %s1267 = sshll.u32 %s1264, 4
          %s1268 = int_to_ptr.hbm [resolvable:$true] %s1267
          %1273 = dma.vmem_to_hbm [thread:$0]  %s1266, 512, %s1268, %s1251, 128, 128, 8
        $region76: #{tpu_custom_call.1} parent=51 // pred_fallthru
          _
      $region52: #{tpu_custom_call.1} parent=5 // pred_fallthru
        _
      %p1274 = scmp.le.s32.totalorder 2, %s21
      // Predicated region
      $region77: #{tpu_custom_call.1} parent=5 // pred_check
        %p1275 = pneg %p1274
      $region78: #{tpu_custom_call.1} parent=5 // pred_check_branch
        %1277 = sbr.rel (%p1275) target = $region80
      $region79: #{tpu_custom_call.1} parent=5 // pred_region
        %s1278 = ssub.s32 %s21, 2
        // Predicated region
        $region81: #{tpu_custom_call.1} parent=79 // pred_check
          %p1279 = pneg %p267
        $region82: #{tpu_custom_call.1} parent=79 // pred_check_branch
          %1281 = sbr.rel (%p1279) target = $region84
        $region83: #{tpu_custom_call.1} parent=79 // pred_region
          %s1282 = sand.u32 %s252, 1
          %s1283 = scalar_lea.sflag [#allocation5], %s1282
          %s1284 = sand.u32 %s252, 1
          %s1285 = smul.addr %s1284, 32
          %s1286 = scalar_lea.vmem [#allocation10], %s1285
          %1288 = dma.done %s1283, 512
        $region84: #{tpu_custom_call.1} parent=79 // pred_fallthru
          _
      $region80: #{tpu_custom_call.1} parent=5 // pred_fallthru
        _
    $region6: #{tpu_custom_call.1} parent=1 // loop_footer
      %s25 = sadd.s32 1, %s21
    $region7: #{tpu_custom_call.1} parent=1 // loop_footer_branch
      %20 = sbr.rel target = $region3
    $region8: #{tpu_custom_call.1} parent=1 // loop_exit
      _
    %1289 = vsyncpa [#allocation4], 1
    %s1290 = scalar_lea.sflag [#allocation4], 1
    %1291 = vsyncpa %s1290, 1
    %1292 = vsyncpa [#allocation7], 1
    %1293 = vsyncpa [#allocation5], 1
    %s1294 = scalar_lea.sflag [#allocation5], 1
    %1295 = vsyncpa %s1294, 1

</llo_original>
